<compile_context>
chip_gen: v7x
topology: tpu7x:2x2x1
jax: 0.10.0
libtpu: 0.0.40
codegen_flags: <defaults>
</compile_context>

<pallas_src>
import functools

import jax
import jax.numpy as jnp
import numpy as np
from jax.experimental import pallas as pl
from jax.experimental.pallas import tpu as pltpu

_LAYER_DIMS = [(28 * 28, 512), (512, 256), (256, 128), (128, 10)]
_OUT_PAD = 128  # fc4 output padded to 128 lanes -> unmasked, lane-dense stores


def _round_up(a, m):
    return (a + m - 1) // m * m


def _cdiv(a, b):
    return -(-a // b)


def _mlp_kernel(x_ref,
                w1_ref, b1_ref,
                w2_ref, b2_ref,
                w3_ref, b3_ref,
                w4_ref, b4_ref,
                o_ref):
    # fp32 x is cast to bf16 on the VPU (filler under the MXU); fp32 accumulation.
    x = x_ref[...].astype(jnp.bfloat16)

    h = jnp.dot(x, w1_ref[...], preferred_element_type=jnp.float32) + b1_ref[...]
    h = jnp.maximum(h, 0.0).astype(jnp.bfloat16)

    h = jnp.dot(h, w2_ref[...], preferred_element_type=jnp.float32) + b2_ref[...]
    h = jnp.maximum(h, 0.0).astype(jnp.bfloat16)

    h = jnp.dot(h, w3_ref[...], preferred_element_type=jnp.float32) + b3_ref[...]
    h = jnp.maximum(h, 0.0).astype(jnp.bfloat16)

    h = jnp.dot(h, w4_ref[...], preferred_element_type=jnp.float32) + b4_ref[...]

    o_ref[...] = h.astype(o_ref.dtype)  # (tile, 128) fp32, lane-dense


def prepare_params(params):
    """One-time param conversion (do NOT call per forward):
    bf16 (in, out) weights, fp32 (1, out) biases, fc4 zero-padded to 128 columns."""
    (w1, b1), (w2, b2), (w3, b3), (w4, b4) = params
    w4p = jnp.pad(w4, ((0, 0), (0, _OUT_PAD - w4.shape[1])))
    b4p = jnp.pad(b4, ((0, 0), (0, _OUT_PAD - b4.shape[1])))
    prepped = (
        w1.astype(jnp.bfloat16), b1.astype(jnp.float32),
        w2.astype(jnp.bfloat16), b2.astype(jnp.float32),
        w3.astype(jnp.bfloat16), b3.astype(jnp.float32),
        w4p.astype(jnp.bfloat16), b4p.astype(jnp.float32),
    )
    return tuple(jax.device_put(p) for p in prepped)


@functools.partial(jax.jit, static_argnames=("batch_tile",))
def fully_connected_nn(x, prepared_params, *, batch_tile=1024):
    """x: (B, 1, 28, 28) fp32 (NCHW, like the torch module). Returns (B, 10) fp32.

    batch_tile=1024 keeps per-step MXU work >> the ~0.35us/step pipeline overhead
    while the working set (fp32 x tile ~3.2MB x2 buffers, bf16 weights ~1.2MB,
    fp32 intermediates, fp32 out 0.5MB x2) stays inside the 48MB scoped-VMEM limit
    on every generation (v7x per-TC VMEM is 64MiB -> do not raise past ~48MB)."""
    w1, b1, w2, b2, w3, b3, w4, b4 = prepared_params
    B = x.shape[0]
    x_flat = x.reshape(B, 28 * 28)  # torch.flatten(x, 1); fp32, no wrapper cast

    # Tile: clamp to the (sublane-aligned) batch; for B > 8 force >= 2 grid steps so
    # the "parallel" axis can shard across v7x's two TensorCores.
    tile = min(batch_tile, _round_up(B, 8))
    if B > 8:
        tile = min(tile, _round_up(_cdiv(B, 2), 8))
    grid_steps = _cdiv(B, tile)  # partial last block handled by Pallas (rows indep.)

    flops = 2 * grid_steps * tile * (784 * 512 + 512 * 256 + 256 * 128 + 128 * _OUT_PAD)
    bytes_accessed = (
        x_flat.size * 4
        + sum(w.size * 2 for w in (w1, w2, w3, w4))
        + sum(b.size * 4 for b in (b1, b2, b3, b4))
        + B * _OUT_PAD * 4
    )

    def replicated(a):
        # Weight/bias tiles are identical for every batch block (constant index map),
        # so they are fetched once and stay resident across the grid.
        return pl.BlockSpec(a.shape, lambda i: (0, 0))

    out = pl.pallas_call(
        _mlp_kernel,
        out_shape=jax.ShapeDtypeStruct((B, _OUT_PAD), jnp.float32),
        grid_spec=pltpu.PrefetchScalarGridSpec(
            num_scalar_prefetch=0,
            grid=(grid_steps,),
            in_specs=[
                pl.BlockSpec((tile, 28 * 28), lambda i: (i, 0)),
                replicated(w1), replicated(b1),
                replicated(w2), replicated(b2),
                replicated(w3), replicated(b3),
                replicated(w4), replicated(b4),
            ],
            out_specs=pl.BlockSpec((tile, _OUT_PAD), lambda i: (i, 0)),
        ),
        compiler_params=pltpu.CompilerParams(
            dimension_semantics=("parallel",),
            vmem_limit_bytes=48 << 20,
        ),
        cost_estimate=pl.CostEstimate(
            flops=flops, transcendentals=0, bytes_accessed=bytes_accessed),
    )(x_flat, w1, b1, w2, b2, w3, b3, w4, b4)

    # Logits live in columns 0..9 (pad columns are exactly 0: zero weights + bias).
    return out[:, :10]


def init_params(key):
    """Deterministic init mimicking torch.nn.Linear default U[-1/sqrt(in), 1/sqrt(in)].
    Weights stored as (in_features, out_features); biases as (1, out_features)."""
    params = []
    for fan_in, fan_out in _LAYER_DIMS:
        key, kw, kb = jax.random.split(key, 3)
        bound = 1.0 / np.sqrt(fan_in)
        w = jax.random.uniform(kw, (fan_in, fan_out), jnp.float32, -bound, bound)
        b = jax.random.uniform(kb, (1, fan_out), jnp.float32, -bound, bound)
        params.append((w, b))
    return params


def reference_forward(x, params):
    """Plain-JAX fp32 reference for correctness checking."""
    (w1, b1), (w2, b2), (w3, b3), (w4, b4) = params
    h = x.reshape(x.shape[0], -1)
    h = jnp.maximum(h @ w1 + b1, 0.0)
    h = jnp.maximum(h @ w2 + b2, 0.0)
    h = jnp.maximum(h @ w3 + b3, 0.0)
    return h @ w4 + b4


if __name__ == "__main__":
    key = jax.random.PRNGKey(0)
    key, kx1, kx2 = jax.random.split(key, 3)

    params = init_params(key)
    prepared = prepare_params(params)  # one-time bf16 conversion / fc4 padding

    # Case 1: tiny batch, not a multiple of 8 -> single grid step, partial block.
    B1 = 6
    x1 = jax.random.normal(kx1, (B1, 1, 28, 28), jnp.float32)
    out1 = jax.block_until_ready(fully_connected_nn(x1, prepared))
    assert out1.shape == (B1, 10), out1.shape
    np.testing.assert_allclose(np.asarray(out1),
                               np.asarray(reference_forward(x1, params)),
                               rtol=5e-2, atol=5e-2)

    # Case 2: mid-size ragged batch -> >=2 grid steps + partial last block.
    B2 = 40
    x2 = jax.random.normal(kx2, (B2, 1, 28, 28), jnp.float32)
    out2 = jax.block_until_ready(fully_connected_nn(x2, prepared))
    assert out2.shape == (B2, 10), out2.shape
    np.testing.assert_allclose(np.asarray(out2),
                               np.asarray(reference_forward(x2, params)),
                               rtol=5e-2, atol=5e-2)

    print("KERNEL_OK")
</pallas_src>

<mosaic_0001>
module attributes {stable_mosaic.version = 11 : i64} {
  func.func @_mlp_kernel(%arg0: i32, %arg1: memref<8x784xf32, #tpu.memory_space<vmem>>, %arg2: memref<784x512xbf16, #tpu.memory_space<vmem>>, %arg3: memref<1x512xf32, #tpu.memory_space<vmem>>, %arg4: memref<512x256xbf16, #tpu.memory_space<vmem>>, %arg5: memref<1x256xf32, #tpu.memory_space<vmem>>, %arg6: memref<256x128xbf16, #tpu.memory_space<vmem>>, %arg7: memref<1x128xf32, #tpu.memory_space<vmem>>, %arg8: memref<128x128xbf16, #tpu.memory_space<vmem>>, %arg9: memref<1x128xf32, #tpu.memory_space<vmem>>, %arg10: memref<8x128xf32, #tpu.memory_space<vmem>>) attributes {dimension_semantics = [#tpu.dimension_semantics<parallel>], iteration_bounds = array<i64: 1>, scalar_prefetch = 0 : i64, scratch_operands = 0 : i64, tpu.core_type = #tpu.core_type<tc>, window_params = [{transform_indices = @transform_0, window_bounds = array<i64: 8, 784>}, {pipeline_mode = #tpu.pipeline_mode<synchronous>, transform_indices = @transform_1, window_bounds = array<i64: 784, 512>}, {pipeline_mode = #tpu.pipeline_mode<synchronous>, transform_indices = @transform_2, window_bounds = array<i64: 1, 512>}, {pipeline_mode = #tpu.pipeline_mode<synchronous>, transform_indices = @transform_3, window_bounds = array<i64: 512, 256>}, {pipeline_mode = #tpu.pipeline_mode<synchronous>, transform_indices = @transform_4, window_bounds = array<i64: 1, 256>}, {pipeline_mode = #tpu.pipeline_mode<synchronous>, transform_indices = @transform_5, window_bounds = array<i64: 256, 128>}, {pipeline_mode = #tpu.pipeline_mode<synchronous>, transform_indices = @transform_6, window_bounds = array<i64: 1, 128>}, {pipeline_mode = #tpu.pipeline_mode<synchronous>, transform_indices = @transform_7, window_bounds = array<i64: 128, 128>}, {pipeline_mode = #tpu.pipeline_mode<synchronous>, transform_indices = @transform_8, window_bounds = array<i64: 1, 128>}, {transform_indices = @transform_9, window_bounds = array<i64: 8, 128>}]} {
    %c0 = arith.constant 0 : index
    %c0_0 = arith.constant 0 : index
    %0 = vector.load %arg1[%c0, %c0_0] : memref<8x784xf32, #tpu.memory_space<vmem>>, vector<8x784xf32>
    %1 = arith.truncf %0 : vector<8x784xf32> to vector<8x784xbf16>
    %c0_1 = arith.constant 0 : index
    %c0_2 = arith.constant 0 : index
    %2 = vector.load %arg2[%c0_1, %c0_2] : memref<784x512xbf16, #tpu.memory_space<vmem>>, vector<784x512xbf16>
    %cst = arith.constant dense<0.000000e+00> : vector<8x512xf32>
    %3 = tpu.matmul %1, %2, %cst {dimension_numbers = #tpu.dot_dimension_numbers<[1], [0], [0], [1], [0, 0, 1, 1], [], []>} : vector<8x784xbf16>, vector<784x512xbf16>, vector<8x512xf32> -> vector<8x512xf32>
    %c0_3 = arith.constant 0 : index
    %c0_4 = arith.constant 0 : index
    %4 = vector.load %arg3[%c0_3, %c0_4] : memref<1x512xf32, #tpu.memory_space<vmem>>, vector<1x512xf32>
    %5 = vector.broadcast %4 : vector<1x512xf32> to vector<8x512xf32>
    %6 = arith.addf %3, %5 : vector<8x512xf32>
    %cst_5 = arith.constant 0.000000e+00 : f32
    %7 = vector.broadcast %cst_5 : f32 to vector<8x512xf32>
    %8 = arith.maximumf %6, %7 : vector<8x512xf32>
    %9 = arith.truncf %8 : vector<8x512xf32> to vector<8x512xbf16>
    %c0_6 = arith.constant 0 : index
    %c0_7 = arith.constant 0 : index
    %10 = vector.load %arg4[%c0_6, %c0_7] : memref<512x256xbf16, #tpu.memory_space<vmem>>, vector<512x256xbf16>
    %cst_8 = arith.constant dense<0.000000e+00> : vector<8x256xf32>
    %11 = tpu.matmul %9, %10, %cst_8 {dimension_numbers = #tpu.dot_dimension_numbers<[1], [0], [0], [1], [0, 0, 1, 1], [], []>} : vector<8x512xbf16>, vector<512x256xbf16>, vector<8x256xf32> -> vector<8x256xf32>
    %c0_9 = arith.constant 0 : index
    %c0_10 = arith.constant 0 : index
    %12 = vector.load %arg5[%c0_9, %c0_10] : memref<1x256xf32, #tpu.memory_space<vmem>>, vector<1x256xf32>
    %13 = vector.broadcast %12 : vector<1x256xf32> to vector<8x256xf32>
    %14 = arith.addf %11, %13 : vector<8x256xf32>
    %cst_11 = arith.constant 0.000000e+00 : f32
    %15 = vector.broadcast %cst_11 : f32 to vector<8x256xf32>
    %16 = arith.maximumf %14, %15 : vector<8x256xf32>
    %17 = arith.truncf %16 : vector<8x256xf32> to vector<8x256xbf16>
    %c0_12 = arith.constant 0 : index
    %c0_13 = arith.constant 0 : index
    %18 = vector.load %arg6[%c0_12, %c0_13] : memref<256x128xbf16, #tpu.memory_space<vmem>>, vector<256x128xbf16>
    %cst_14 = arith.constant dense<0.000000e+00> : vector<8x128xf32>
    %19 = tpu.matmul %17, %18, %cst_14 {dimension_numbers = #tpu.dot_dimension_numbers<[1], [0], [0], [1], [0, 0, 1, 1], [], []>} : vector<8x256xbf16>, vector<256x128xbf16>, vector<8x128xf32> -> vector<8x128xf32>
    %c0_15 = arith.constant 0 : index
    %c0_16 = arith.constant 0 : index
    %20 = vector.load %arg7[%c0_15, %c0_16] : memref<1x128xf32, #tpu.memory_space<vmem>>, vector<1x128xf32>
    %21 = vector.broadcast %20 : vector<1x128xf32> to vector<8x128xf32>
    %22 = arith.addf %19, %21 : vector<8x128xf32>
    %cst_17 = arith.constant 0.000000e+00 : f32
    %23 = vector.broadcast %cst_17 : f32 to vector<8x128xf32>
    %24 = arith.maximumf %22, %23 : vector<8x128xf32>
    %25 = arith.truncf %24 : vector<8x128xf32> to vector<8x128xbf16>
    %c0_18 = arith.constant 0 : index
    %c0_19 = arith.constant 0 : index
    %26 = vector.load %arg8[%c0_18, %c0_19] : memref<128x128xbf16, #tpu.memory_space<vmem>>, vector<128x128xbf16>
    %cst_20 = arith.constant dense<0.000000e+00> : vector<8x128xf32>
    %27 = tpu.matmul %25, %26, %cst_20 {dimension_numbers = #tpu.dot_dimension_numbers<[1], [0], [0], [1], [0, 0, 1, 1], [], []>} : vector<8x128xbf16>, vector<128x128xbf16>, vector<8x128xf32> -> vector<8x128xf32>
    %c0_21 = arith.constant 0 : index
    %c0_22 = arith.constant 0 : index
    %28 = vector.load %arg9[%c0_21, %c0_22] : memref<1x128xf32, #tpu.memory_space<vmem>>, vector<1x128xf32>
    %29 = vector.broadcast %28 : vector<1x128xf32> to vector<8x128xf32>
    %30 = arith.addf %27, %29 : vector<8x128xf32>
    %c0_23 = arith.constant 0 : index
    %c0_24 = arith.constant 0 : index
    %31 = vector.load %arg10[%c0_23, %c0_24] : memref<8x128xf32, #tpu.memory_space<vmem>>, vector<8x128xf32>
    tpu.vector_store %arg10[%c0_23, %c0_24], %30 {strides = array<i32>} : memref<8x128xf32, #tpu.memory_space<vmem>>, vector<8x128xf32>,
    return
  }
  func.func @transform_0(%arg0: i32) -> (i32, i32) {
    %c0_i32 = arith.constant 0 : i32
    %c0_i32_0 = arith.constant 0 : i32
    return %arg0, %c0_i32 : i32, i32
  }
  func.func @transform_1(%arg0: i32) -> (i32, i32) {
    %c0_i32 = arith.constant 0 : i32
    %c0_i32_0 = arith.constant 0 : i32
    %c0_i32_1 = arith.constant 0 : i32
    return %c0_i32, %c0_i32_0 : i32, i32
  }
  func.func @transform_2(%arg0: i32) -> (i32, i32) {
    %c0_i32 = arith.constant 0 : i32
    %c0_i32_0 = arith.constant 0 : i32
    %c0_i32_1 = arith.constant 0 : i32
    return %c0_i32, %c0_i32_0 : i32, i32
  }
  func.func @transform_3(%arg0: i32) -> (i32, i32) {
    %c0_i32 = arith.constant 0 : i32
    %c0_i32_0 = arith.constant 0 : i32
    %c0_i32_1 = arith.constant 0 : i32
    return %c0_i32, %c0_i32_0 : i32, i32
  }
  func.func @transform_4(%arg0: i32) -> (i32, i32) {
    %c0_i32 = arith.constant 0 : i32
    %c0_i32_0 = arith.constant 0 : i32
    %c0_i32_1 = arith.constant 0 : i32
    return %c0_i32, %c0_i32_0 : i32, i32
  }
  func.func @transform_5(%arg0: i32) -> (i32, i32) {
    %c0_i32 = arith.constant 0 : i32
    %c0_i32_0 = arith.constant 0 : i32
    %c0_i32_1 = arith.constant 0 : i32
    return %c0_i32, %c0_i32_0 : i32, i32
  }
  func.func @transform_6(%arg0: i32) -> (i32, i32) {
    %c0_i32 = arith.constant 0 : i32
    %c0_i32_0 = arith.constant 0 : i32
    %c0_i32_1 = arith.constant 0 : i32
    return %c0_i32, %c0_i32_0 : i32, i32
  }
  func.func @transform_7(%arg0: i32) -> (i32, i32) {
    %c0_i32 = arith.constant 0 : i32
    %c0_i32_0 = arith.constant 0 : i32
    %c0_i32_1 = arith.constant 0 : i32
    return %c0_i32, %c0_i32_0 : i32, i32
  }
  func.func @transform_8(%arg0: i32) -> (i32, i32) {
    %c0_i32 = arith.constant 0 : i32
    %c0_i32_0 = arith.constant 0 : i32
    %c0_i32_1 = arith.constant 0 : i32
    return %c0_i32, %c0_i32_0 : i32, i32
  }
  func.func @transform_9(%arg0: i32) -> (i32, i32) {
    %c0_i32 = arith.constant 0 : i32
    %c0_i32_0 = arith.constant 0 : i32
    return %arg0, %c0_i32 : i32, i32
  }
}

</mosaic_0001>

<llo_original>
// kernel: fully_connected_nn.1
$region0: #{fully_connected_nn.1}
  #allocation0 [shape = 'u32[]', space=smem, size = 0x4, offset = 0x4, fixed_abs, tag = 'smem constant byte address 0x4 - core index']
  #allocation1 [shape = 'u32[144,128]{1,0:T(1,128)}', space=vmem, size = 0x12000, scoped, tag = 'internal scratch']
  %s0 = inlined_call_operand.vmem [shape: f32[6,784], index: 0, kind: input, shape index: {}]
  %s1 = inlined_call_operand.hbm [shape: bf16[784,512], index: 1, kind: input, shape index: {}]
  %s2 = inlined_call_operand.vmem [shape: f32[1,512], index: 2, kind: input, shape index: {}]
  %s3 = inlined_call_operand.vmem [shape: bf16[512,256], index: 3, kind: input, shape index: {}]
  %s4 = inlined_call_operand.vmem [shape: f32[1,256], index: 4, kind: input, shape index: {}]
  %s5 = inlined_call_operand.hbm [shape: bf16[256,128], index: 5, kind: input, shape index: {}]
  %s6 = inlined_call_operand.vmem [shape: f32[1,128], index: 6, kind: input, shape index: {}]
  %s7 = inlined_call_operand.vmem [shape: bf16[128,128], index: 7, kind: input, shape index: {}]
  %s8 = inlined_call_operand.vmem [shape: f32[1,128], index: 8, kind: input, shape index: {}]
  %s9 = inlined_call_operand.hbm [shape: f32[6,128], index: 9, kind: output, shape index: {}]
  %s10 = sld [smem:[#allocation0]]
  $region54: #{fully_connected_nn.1} parent=0
    _
  %s12 = ssub.s32 1, %s10
  %s13 = scalar_select 0, %s12, %s10
  $region1: #{fully_connected_nn.1} parent=0
    #allocation2 [shape = 'u8[802816]{0}', space=vmem, size = 0xc4000, scoped, tag = 'input window, operand 1, single buffered']
    #allocation3 [shape = 's32[1]{0}', space=sflag, size = 0x4, scoped, tag = 'scoped memory for fully_connected_nn.1']
    #allocation4 [shape = 's32[1]{0}', space=sflag, size = 0x4, scoped, tag = 'scoped memory for fully_connected_nn.1']
    #allocation5 [shape = 'u8[65536]{0}', space=vmem, size = 0x10000, scoped, tag = 'input window, operand 5, single buffered']
    #allocation6 [shape = 's32[1]{0}', space=sflag, size = 0x4, scoped, tag = 'scoped memory for fully_connected_nn.1']
    #allocation7 [shape = 'u8[4096]{0}', space=vmem, size = 0x1000, scoped, tag = 'output window, operand 0, single buffered']
    %14 = vsyncpa [#allocation3], 0
    %15 = vsyncpa [#allocation6], 0
    %16 = vsyncpa [#allocation4], 0
    // Predicated region
    $region2: #{fully_connected_nn.1} parent=1 // pred_check
      _
    $region3: #{fully_connected_nn.1} parent=1 // pred_check_branch
      %18 = sbr.rel (0) target = $region5
    $region4: #{fully_connected_nn.1} parent=1 // pred_region
      _
    $region5: #{fully_connected_nn.1} parent=1 // pred_fallthru
      _
    // Predicated region
    $region6: #{fully_connected_nn.1} parent=1 // pred_check
      _
    $region7: #{fully_connected_nn.1} parent=1 // pred_check_branch
      %20 = sbr.rel (0) target = $region9
    $region8: #{fully_connected_nn.1} parent=1 // pred_region
      %s22 = ssub.s32 25088, 25088
      %23 = vsyncadd [#allocation3], %s22
      %s24 = sshll.u32 [#allocation2], 4
      %s25 = int_to_ptr.vmem [resolvable:$true] %s24
      %30 = dma.hbm_to_vmem [thread:$0]  %s1, 25088, %s25, [#allocation3], 256, 256, 16
    $region9: #{fully_connected_nn.1} parent=1 // pred_fallthru
      _
    // Predicated region
    $region10: #{fully_connected_nn.1} parent=1 // pred_check
      _
    $region11: #{fully_connected_nn.1} parent=1 // pred_check_branch
      %32 = sbr.rel (0) target = $region13
    $region12: #{fully_connected_nn.1} parent=1 // pred_region
      _
    $region13: #{fully_connected_nn.1} parent=1 // pred_fallthru
      _
    // Predicated region
    $region14: #{fully_connected_nn.1} parent=1 // pred_check
      _
    $region15: #{fully_connected_nn.1} parent=1 // pred_check_branch
      %34 = sbr.rel (0) target = $region17
    $region16: #{fully_connected_nn.1} parent=1 // pred_region
      _
    $region17: #{fully_connected_nn.1} parent=1 // pred_fallthru
      _
    // Predicated region
    $region18: #{fully_connected_nn.1} parent=1 // pred_check
      _
    $region19: #{fully_connected_nn.1} parent=1 // pred_check_branch
      %36 = sbr.rel (0) target = $region21
    $region20: #{fully_connected_nn.1} parent=1 // pred_region
      _
    $region21: #{fully_connected_nn.1} parent=1 // pred_fallthru
      _
    // Predicated region
    $region22: #{fully_connected_nn.1} parent=1 // pred_check
      _
    $region23: #{fully_connected_nn.1} parent=1 // pred_check_branch
      %38 = sbr.rel (0) target = $region25
    $region24: #{fully_connected_nn.1} parent=1 // pred_region
      %s40 = ssub.s32 2048, 2048
      %41 = vsyncadd [#allocation6], %s40
      %s42 = sshll.u32 [#allocation5], 4
      %s43 = int_to_ptr.vmem [resolvable:$true] %s42
      %48 = dma.hbm_to_vmem [thread:$0]  %s5, 2048, %s43, [#allocation6], 64, 64, 4
    $region25: #{fully_connected_nn.1} parent=1 // pred_fallthru
      _
    // Predicated region
    $region26: #{fully_connected_nn.1} parent=1 // pred_check
      _
    $region27: #{fully_connected_nn.1} parent=1 // pred_check_branch
      %50 = sbr.rel (0) target = $region29
    $region28: #{fully_connected_nn.1} parent=1 // pred_region
      _
    $region29: #{fully_connected_nn.1} parent=1 // pred_fallthru
      _
    // Predicated region
    $region30: #{fully_connected_nn.1} parent=1 // pred_check
      _
    $region31: #{fully_connected_nn.1} parent=1 // pred_check_branch
      %52 = sbr.rel (0) target = $region33
    $region32: #{fully_connected_nn.1} parent=1 // pred_region
      _
    $region33: #{fully_connected_nn.1} parent=1 // pred_fallthru
      _
    // Predicated region
    $region34: #{fully_connected_nn.1} parent=1 // pred_check
      _
    $region35: #{fully_connected_nn.1} parent=1 // pred_check_branch
      %54 = sbr.rel (0) target = $region37
    $region36: #{fully_connected_nn.1} parent=1 // pred_region
      _
    $region37: #{fully_connected_nn.1} parent=1 // pred_fallthru
      _
    // Predicated region
    $region38: #{fully_connected_nn.1} parent=1 // pred_check
      _
    $region39: #{fully_connected_nn.1} parent=1 // pred_check_branch
      %56 = sbr.rel (0) target = $region41
    $region40: #{fully_connected_nn.1} parent=1 // pred_region
      %57 = dma.done [#allocation3], 25088
    $region41: #{fully_connected_nn.1} parent=1 // pred_fallthru
      _
    // Predicated region
    $region42: #{fully_connected_nn.1} parent=1 // pred_check
      _
    $region43: #{fully_connected_nn.1} parent=1 // pred_check_branch
      %59 = sbr.rel (0) target = $region45
    $region44: #{fully_connected_nn.1} parent=1 // pred_region
      %60 = dma.done [#allocation6], 2048
    $region45: #{fully_connected_nn.1} parent=1 // pred_fallthru
      _
    %v62 = vld [vmem:[%s0] sm:$0xff]
    %v63 = vld [vmem:[%s0 + $0x8] sm:$0xff]
    %v64 = vld [vmem:[%s0 + $0x10] sm:$0xff]
    %v65 = vld [vmem:[%s0 + $0x18] sm:$0xff]
    %v66 = vld [vmem:[%s0 + $0x20] sm:$0xff]
    %v67 = vld [vmem:[%s0 + $0x28] sm:$0xff]
    %v68 = vld [vmem:[%s0 + $0x30] sm:$0xff]
    %v69 = vpack.c.bf16 %v62, %v62
    %v70 = vpack.c.bf16 %v63, %v63
    %v71 = vpack.c.bf16 %v64, %v64
    %v72 = vpack.c.bf16 %v65, %v65
    %v73 = vpack.c.bf16 %v66, %v66
    %v74 = vpack.c.bf16 %v67, %v67
    %v75 = vpack.c.bf16 %v68, %v68
    %v76 = vld [vmem:[#allocation2] sm:$0xff]
    %v77 = vld [vmem:[#allocation2 + $0x8] sm:$0xff]
    %v78 = vld [vmem:[#allocation2 + $0x10] sm:$0xff]
    %v79 = vld [vmem:[#allocation2 + $0x18] sm:$0xff]
    %v80 = vld [vmem:[#allocation2 + $0x20] sm:$0xff]
    %v81 = vld [vmem:[#allocation2 + $0x28] sm:$0xff]
    %v82 = vld [vmem:[#allocation2 + $0x30] sm:$0xff]
    %v83 = vld [vmem:[#allocation2 + $0x38] sm:$0xff]
    %v84 = vld [vmem:[#allocation2 + $0x40] sm:$0xff]
    %v85 = vld [vmem:[#allocation2 + $0x48] sm:$0xff]
    %v86 = vld [vmem:[#allocation2 + $0x50] sm:$0xff]
    %v87 = vld [vmem:[#allocation2 + $0x58] sm:$0xff]
    %v88 = vld [vmem:[#allocation2 + $0x60] sm:$0xff]
    %v89 = vld [vmem:[#allocation2 + $0x68] sm:$0xff]
    %v90 = vld [vmem:[#allocation2 + $0x70] sm:$0xff]
    %v91 = vld [vmem:[#allocation2 + $0x78] sm:$0xff]
    %v92 = vld [vmem:[#allocation2 + $0x80] sm:$0xff]
    %v93 = vld [vmem:[#allocation2 + $0x88] sm:$0xff]
    %v94 = vld [vmem:[#allocation2 + $0x90] sm:$0xff]
    %v95 = vld [vmem:[#allocation2 + $0x98] sm:$0xff]
    %v96 = vld [vmem:[#allocation2 + $0xa0] sm:$0xff]
    %v97 = vld [vmem:[#allocation2 + $0xa8] sm:$0xff]
    %v98 = vld [vmem:[#allocation2 + $0xb0] sm:$0xff]
    %v99 = vld [vmem:[#allocation2 + $0xb8] sm:$0xff]
    %v100 = vld [vmem:[#allocation2 + $0xc0] sm:$0xff]
    %v101 = vld [vmem:[#allocation2 + $0xc8] sm:$0xff]
    %v102 = vld [vmem:[#allocation2 + $0xd0] sm:$0xff]
    %v103 = vld [vmem:[#allocation2 + $0xd8] sm:$0xff]
    %v104 = vld [vmem:[#allocation2 + $0xe0] sm:$0xff]
    %v105 = vld [vmem:[#allocation2 + $0xe8] sm:$0xff]
    %v106 = vld [vmem:[#allocation2 + $0xf0] sm:$0xff]
    %v107 = vld [vmem:[#allocation2 + $0xf8] sm:$0xff]
    %v108 = vld [vmem:[#allocation2 + $0x100] sm:$0xff]
    %v109 = vld [vmem:[#allocation2 + $0x108] sm:$0xff]
    %v110 = vld [vmem:[#allocation2 + $0x110] sm:$0xff]
    %v111 = vld [vmem:[#allocation2 + $0x118] sm:$0xff]
    %v112 = vld [vmem:[#allocation2 + $0x120] sm:$0xff]
    %v113 = vld [vmem:[#allocation2 + $0x128] sm:$0xff]
    %v114 = vld [vmem:[#allocation2 + $0x130] sm:$0xff]
    %v115 = vld [vmem:[#allocation2 + $0x138] sm:$0xff]
    %v116 = vld [vmem:[#allocation2 + $0x140] sm:$0xff]
    %v117 = vld [vmem:[#allocation2 + $0x148] sm:$0xff]
    %v118 = vld [vmem:[#allocation2 + $0x150] sm:$0xff]
    %v119 = vld [vmem:[#allocation2 + $0x158] sm:$0xff]
    %v120 = vld [vmem:[#allocation2 + $0x160] sm:$0xff]
    %v121 = vld [vmem:[#allocation2 + $0x168] sm:$0xff]
    %v122 = vld [vmem:[#allocation2 + $0x170] sm:$0xff]
    %v123 = vld [vmem:[#allocation2 + $0x178] sm:$0xff]
    %v124 = vld [vmem:[#allocation2 + $0x180] sm:$0xff]
    %v125 = vld [vmem:[#allocation2 + $0x188] sm:$0xff]
    %v126 = vld [vmem:[#allocation2 + $0x190] sm:$0xff]
    %v127 = vld [vmem:[#allocation2 + $0x198] sm:$0xff]
    %v128 = vld [vmem:[#allocation2 + $0x1a0] sm:$0xff]
    %v129 = vld [vmem:[#allocation2 + $0x1a8] sm:$0xff]
    %v130 = vld [vmem:[#allocation2 + $0x1b0] sm:$0xff]
    %v131 = vld [vmem:[#allocation2 + $0x1b8] sm:$0xff]
    %v132 = vld [vmem:[#allocation2 + $0x1c0] sm:$0xff]
    %v133 = vld [vmem:[#allocation2 + $0x1c8] sm:$0xff]
    %v134 = vld [vmem:[#allocation2 + $0x1d0] sm:$0xff]
    %v135 = vld [vmem:[#allocation2 + $0x1d8] sm:$0xff]
    %v136 = vld [vmem:[#allocation2 + $0x1e0] sm:$0xff]
    %v137 = vld [vmem:[#allocation2 + $0x1e8] sm:$0xff]
    %v138 = vld [vmem:[#allocation2 + $0x1f0] sm:$0xff]
    %v139 = vld [vmem:[#allocation2 + $0x1f8] sm:$0xff]
    %v140 = vld [vmem:[#allocation2 + $0x200] sm:$0xff]
    %v141 = vld [vmem:[#allocation2 + $0x208] sm:$0xff]
    %v142 = vld [vmem:[#allocation2 + $0x210] sm:$0xff]
    %v143 = vld [vmem:[#allocation2 + $0x218] sm:$0xff]
    %v144 = vld [vmem:[#allocation2 + $0x220] sm:$0xff]
    %v145 = vld [vmem:[#allocation2 + $0x228] sm:$0xff]
    %v146 = vld [vmem:[#allocation2 + $0x230] sm:$0xff]
    %v147 = vld [vmem:[#allocation2 + $0x238] sm:$0xff]
    %v148 = vld [vmem:[#allocation2 + $0x240] sm:$0xff]
    %v149 = vld [vmem:[#allocation2 + $0x248] sm:$0xff]
    %v150 = vld [vmem:[#allocation2 + $0x250] sm:$0xff]
    %v151 = vld [vmem:[#allocation2 + $0x258] sm:$0xff]
    %v152 = vld [vmem:[#allocation2 + $0x260] sm:$0xff]
    %v153 = vld [vmem:[#allocation2 + $0x268] sm:$0xff]
    %v154 = vld [vmem:[#allocation2 + $0x270] sm:$0xff]
    %v155 = vld [vmem:[#allocation2 + $0x278] sm:$0xff]
    %v156 = vld [vmem:[#allocation2 + $0x280] sm:$0xff]
    %v157 = vld [vmem:[#allocation2 + $0x288] sm:$0xff]
    %v158 = vld [vmem:[#allocation2 + $0x290] sm:$0xff]
    %v159 = vld [vmem:[#allocation2 + $0x298] sm:$0xff]
    %v160 = vld [vmem:[#allocation2 + $0x2a0] sm:$0xff]
    %v161 = vld [vmem:[#allocation2 + $0x2a8] sm:$0xff]
    %v162 = vld [vmem:[#allocation2 + $0x2b0] sm:$0xff]
    %v163 = vld [vmem:[#allocation2 + $0x2b8] sm:$0xff]
    %v164 = vld [vmem:[#allocation2 + $0x2c0] sm:$0xff]
    %v165 = vld [vmem:[#allocation2 + $0x2c8] sm:$0xff]
    %v166 = vld [vmem:[#allocation2 + $0x2d0] sm:$0xff]
    %v167 = vld [vmem:[#allocation2 + $0x2d8] sm:$0xff]
    %v168 = vld [vmem:[#allocation2 + $0x2e0] sm:$0xff]
    %v169 = vld [vmem:[#allocation2 + $0x2e8] sm:$0xff]
    %v170 = vld [vmem:[#allocation2 + $0x2f0] sm:$0xff]
    %v171 = vld [vmem:[#allocation2 + $0x2f8] sm:$0xff]
    %v172 = vld [vmem:[#allocation2 + $0x300] sm:$0xff]
    %v173 = vld [vmem:[#allocation2 + $0x308] sm:$0xff]
    %v174 = vld [vmem:[#allocation2 + $0x310] sm:$0xff]
    %v175 = vld [vmem:[#allocation2 + $0x318] sm:$0xff]
    %v176 = vld [vmem:[#allocation2 + $0x320] sm:$0xff]
    %v177 = vld [vmem:[#allocation2 + $0x328] sm:$0xff]
    %v178 = vld [vmem:[#allocation2 + $0x330] sm:$0xff]
    %v179 = vld [vmem:[#allocation2 + $0x338] sm:$0xff]
    %v180 = vld [vmem:[#allocation2 + $0x340] sm:$0xff]
    %v181 = vld [vmem:[#allocation2 + $0x348] sm:$0xff]
    %v182 = vld [vmem:[#allocation2 + $0x350] sm:$0xff]
    %v183 = vld [vmem:[#allocation2 + $0x358] sm:$0xff]
    %v184 = vld [vmem:[#allocation2 + $0x360] sm:$0xff]
    %v185 = vld [vmem:[#allocation2 + $0x368] sm:$0xff]
    %v186 = vld [vmem:[#allocation2 + $0x370] sm:$0xff]
    %v187 = vld [vmem:[#allocation2 + $0x378] sm:$0xff]
    %v188 = vld [vmem:[#allocation2 + $0x380] sm:$0xff]
    %v189 = vld [vmem:[#allocation2 + $0x388] sm:$0xff]
    %v190 = vld [vmem:[#allocation2 + $0x390] sm:$0xff]
    %v191 = vld [vmem:[#allocation2 + $0x398] sm:$0xff]
    %v192 = vld [vmem:[#allocation2 + $0x3a0] sm:$0xff]
    %v193 = vld [vmem:[#allocation2 + $0x3a8] sm:$0xff]
    %v194 = vld [vmem:[#allocation2 + $0x3b0] sm:$0xff]
    %v195 = vld [vmem:[#allocation2 + $0x3b8] sm:$0xff]
    %v196 = vld [vmem:[#allocation2 + $0x3c0] sm:$0xff]
    %v197 = vld [vmem:[#allocation2 + $0x3c8] sm:$0xff]
    %v198 = vld [vmem:[#allocation2 + $0x3d0] sm:$0xff]
    %v199 = vld [vmem:[#allocation2 + $0x3d8] sm:$0xff]
    %v200 = vld [vmem:[#allocation2 + $0x3e0] sm:$0xff]
    %v201 = vld [vmem:[#allocation2 + $0x3e8] sm:$0xff]
    %v202 = vld [vmem:[#allocation2 + $0x3f0] sm:$0xff]
    %v203 = vld [vmem:[#allocation2 + $0x3f8] sm:$0xff]
    %v204 = vld [vmem:[#allocation2 + $0x400] sm:$0xff]
    %v205 = vld [vmem:[#allocation2 + $0x408] sm:$0xff]
    %v206 = vld [vmem:[#allocation2 + $0x410] sm:$0xff]
    %v207 = vld [vmem:[#allocation2 + $0x418] sm:$0xff]
    %v208 = vld [vmem:[#allocation2 + $0x420] sm:$0xff]
    %v209 = vld [vmem:[#allocation2 + $0x428] sm:$0xff]
    %v210 = vld [vmem:[#allocation2 + $0x430] sm:$0xff]
    %v211 = vld [vmem:[#allocation2 + $0x438] sm:$0xff]
    %v212 = vld [vmem:[#allocation2 + $0x440] sm:$0xff]
    %v213 = vld [vmem:[#allocation2 + $0x448] sm:$0xff]
    %v214 = vld [vmem:[#allocation2 + $0x450] sm:$0xff]
    %v215 = vld [vmem:[#allocation2 + $0x458] sm:$0xff]
    %v216 = vld [vmem:[#allocation2 + $0x460] sm:$0xff]
    %v217 = vld [vmem:[#allocation2 + $0x468] sm:$0xff]
    %v218 = vld [vmem:[#allocation2 + $0x470] sm:$0xff]
    %v219 = vld [vmem:[#allocation2 + $0x478] sm:$0xff]
    %v220 = vld [vmem:[#allocation2 + $0x480] sm:$0xff]
    %v221 = vld [vmem:[#allocation2 + $0x488] sm:$0xff]
    %v222 = vld [vmem:[#allocation2 + $0x490] sm:$0xff]
    %v223 = vld [vmem:[#allocation2 + $0x498] sm:$0xff]
    %v224 = vld [vmem:[#allocation2 + $0x4a0] sm:$0xff]
    %v225 = vld [vmem:[#allocation2 + $0x4a8] sm:$0xff]
    %v226 = vld [vmem:[#allocation2 + $0x4b0] sm:$0xff]
    %v227 = vld [vmem:[#allocation2 + $0x4b8] sm:$0xff]
    %v228 = vld [vmem:[#allocation2 + $0x4c0] sm:$0xff]
    %v229 = vld [vmem:[#allocation2 + $0x4c8] sm:$0xff]
    %v230 = vld [vmem:[#allocation2 + $0x4d0] sm:$0xff]
    %v231 = vld [vmem:[#allocation2 + $0x4d8] sm:$0xff]
    %v232 = vld [vmem:[#allocation2 + $0x4e0] sm:$0xff]
    %v233 = vld [vmem:[#allocation2 + $0x4e8] sm:$0xff]
    %v234 = vld [vmem:[#allocation2 + $0x4f0] sm:$0xff]
    %v235 = vld [vmem:[#allocation2 + $0x4f8] sm:$0xff]
    %v236 = vld [vmem:[#allocation2 + $0x500] sm:$0xff]
    %v237 = vld [vmem:[#allocation2 + $0x508] sm:$0xff]
    %v238 = vld [vmem:[#allocation2 + $0x510] sm:$0xff]
    %v239 = vld [vmem:[#allocation2 + $0x518] sm:$0xff]
    %v240 = vld [vmem:[#allocation2 + $0x520] sm:$0xff]
    %v241 = vld [vmem:[#allocation2 + $0x528] sm:$0xff]
    %v242 = vld [vmem:[#allocation2 + $0x530] sm:$0xff]
    %v243 = vld [vmem:[#allocation2 + $0x538] sm:$0xff]
    %v244 = vld [vmem:[#allocation2 + $0x540] sm:$0xff]
    %v245 = vld [vmem:[#allocation2 + $0x548] sm:$0xff]
    %v246 = vld [vmem:[#allocation2 + $0x550] sm:$0xff]
    %v247 = vld [vmem:[#allocation2 + $0x558] sm:$0xff]
    %v248 = vld [vmem:[#allocation2 + $0x560] sm:$0xff]
    %v249 = vld [vmem:[#allocation2 + $0x568] sm:$0xff]
    %v250 = vld [vmem:[#allocation2 + $0x570] sm:$0xff]
    %v251 = vld [vmem:[#allocation2 + $0x578] sm:$0xff]
    %v252 = vld [vmem:[#allocation2 + $0x580] sm:$0xff]
    %v253 = vld [vmem:[#allocation2 + $0x588] sm:$0xff]
    %v254 = vld [vmem:[#allocation2 + $0x590] sm:$0xff]
    %v255 = vld [vmem:[#allocation2 + $0x598] sm:$0xff]
    %v256 = vld [vmem:[#allocation2 + $0x5a0] sm:$0xff]
    %v257 = vld [vmem:[#allocation2 + $0x5a8] sm:$0xff]
    %v258 = vld [vmem:[#allocation2 + $0x5b0] sm:$0xff]
    %v259 = vld [vmem:[#allocation2 + $0x5b8] sm:$0xff]
    %v260 = vld [vmem:[#allocation2 + $0x5c0] sm:$0xff]
    %v261 = vld [vmem:[#allocation2 + $0x5c8] sm:$0xff]
    %v262 = vld [vmem:[#allocation2 + $0x5d0] sm:$0xff]
    %v263 = vld [vmem:[#allocation2 + $0x5d8] sm:$0xff]
    %v264 = vld [vmem:[#allocation2 + $0x5e0] sm:$0xff]
    %v265 = vld [vmem:[#allocation2 + $0x5e8] sm:$0xff]
    %v266 = vld [vmem:[#allocation2 + $0x5f0] sm:$0xff]
    %v267 = vld [vmem:[#allocation2 + $0x5f8] sm:$0xff]
    %v268 = vld [vmem:[#allocation2 + $0x600] sm:$0xff]
    %v269 = vld [vmem:[#allocation2 + $0x608] sm:$0xff]
    %v270 = vld [vmem:[#allocation2 + $0x610] sm:$0xff]
    %v271 = vld [vmem:[#allocation2 + $0x618] sm:$0xff]
    %v272 = vld [vmem:[%s2] sm:$0xf]
    %v274 = vlaneseq
    %v275 = vshrl.u32 %v274, 7
    %v276 = vsub.s32 0, %v275
    %v277 = vrot.slane %v272, %v276
    %v278 = vlaneseq
    %v279 = vshrl.u32 %v278, 7
    %v280 = vsub.s32 1, %v279
    %v281 = vrot.slane %v272, %v280
    %v282 = vlaneseq
    %v283 = vshrl.u32 %v282, 7
    %v284 = vsub.s32 2, %v283
    %v285 = vrot.slane %v272, %v284
    %v286 = vlaneseq
    %v287 = vshrl.u32 %v286, 7
    %v288 = vsub.s32 3, %v287
    %v289 = vrot.slane %v272, %v288
    %v490 = vunpack.c.l.b16 %v76
    %v491 = vunpack.c.h.b16 %v76
    %v492 = vunpack.c.l.b16 %v77
    %v493 = vunpack.c.h.b16 %v77
    %v494 = vunpack.c.l.b16 %v78
    %v495 = vunpack.c.h.b16 %v78
    %v496 = vunpack.c.l.b16 %v79
    %v497 = vunpack.c.h.b16 %v79
    %v498 = vunpack.c.l.b16 %v80
    %v499 = vunpack.c.h.b16 %v80
    %v500 = vunpack.c.l.b16 %v81
    %v501 = vunpack.c.h.b16 %v81
    %v502 = vunpack.c.l.b16 %v82
    %v503 = vunpack.c.h.b16 %v82
    %v504 = vunpack.c.l.b16 %v83
    %v505 = vunpack.c.h.b16 %v83
    %v506 = vunpack.c.l.b16 %v84
    %v507 = vunpack.c.h.b16 %v84
    %v508 = vunpack.c.l.b16 %v85
    %v509 = vunpack.c.h.b16 %v85
    %v510 = vunpack.c.l.b16 %v86
    %v511 = vunpack.c.h.b16 %v86
    %v512 = vunpack.c.l.b16 %v87
    %v513 = vunpack.c.h.b16 %v87
    %v514 = vunpack.c.l.b16 %v88
    %v515 = vunpack.c.h.b16 %v88
    %v516 = vunpack.c.l.b16 %v89
    %v517 = vunpack.c.h.b16 %v89
    %v518 = vunpack.c.l.b16 %v90
    %v519 = vunpack.c.h.b16 %v90
    %v520 = vunpack.c.l.b16 %v91
    %v521 = vunpack.c.h.b16 %v91
    %v522 = vunpack.c.l.b16 %v92
    %v523 = vunpack.c.h.b16 %v92
    %v524 = vunpack.c.l.b16 %v93
    %v525 = vunpack.c.h.b16 %v93
    %v526 = vunpack.c.l.b16 %v94
    %v527 = vunpack.c.h.b16 %v94
    %v528 = vunpack.c.l.b16 %v95
    %v529 = vunpack.c.h.b16 %v95
    %v530 = vunpack.c.l.b16 %v96
    %v531 = vunpack.c.h.b16 %v96
    %v532 = vunpack.c.l.b16 %v97
    %v533 = vunpack.c.h.b16 %v97
    %v534 = vunpack.c.l.b16 %v98
    %v535 = vunpack.c.h.b16 %v98
    %v536 = vunpack.c.l.b16 %v99
    %v537 = vunpack.c.h.b16 %v99
    %v538 = vunpack.c.l.b16 %v100
    %v539 = vunpack.c.h.b16 %v100
    %v540 = vunpack.c.l.b16 %v101
    %v541 = vunpack.c.h.b16 %v101
    %v542 = vunpack.c.l.b16 %v102
    %v543 = vunpack.c.h.b16 %v102
    %v544 = vunpack.c.l.b16 %v103
    %v545 = vunpack.c.h.b16 %v103
    %v546 = vunpack.c.l.b16 %v104
    %v547 = vunpack.c.h.b16 %v104
    %v548 = vunpack.c.l.b16 %v105
    %v549 = vunpack.c.h.b16 %v105
    %v550 = vunpack.c.l.b16 %v106
    %v551 = vunpack.c.h.b16 %v106
    %v552 = vunpack.c.l.b16 %v107
    %v553 = vunpack.c.h.b16 %v107
    %v554 = vunpack.c.l.b16 %v108
    %v555 = vunpack.c.h.b16 %v108
    %v556 = vunpack.c.l.b16 %v109
    %v557 = vunpack.c.h.b16 %v109
    %v558 = vunpack.c.l.b16 %v110
    %v559 = vunpack.c.h.b16 %v110
    %v560 = vunpack.c.l.b16 %v111
    %v561 = vunpack.c.h.b16 %v111
    %v562 = vunpack.c.l.b16 %v112
    %v563 = vunpack.c.h.b16 %v112
    %v564 = vunpack.c.l.b16 %v113
    %v565 = vunpack.c.h.b16 %v113
    %v566 = vunpack.c.l.b16 %v114
    %v567 = vunpack.c.h.b16 %v114
    %v568 = vunpack.c.l.b16 %v115
    %v569 = vunpack.c.h.b16 %v115
    %v570 = vunpack.c.l.b16 %v116
    %v571 = vunpack.c.h.b16 %v116
    %v572 = vunpack.c.l.b16 %v117
    %v573 = vunpack.c.h.b16 %v117
    %v574 = vunpack.c.l.b16 %v118
    %v575 = vunpack.c.h.b16 %v118
    %v576 = vunpack.c.l.b16 %v119
    %v577 = vunpack.c.h.b16 %v119
    %v578 = vunpack.c.l.b16 %v120
    %v579 = vunpack.c.h.b16 %v120
    %v580 = vunpack.c.l.b16 %v121
    %v581 = vunpack.c.h.b16 %v121
    %v582 = vunpack.c.l.b16 %v122
    %v583 = vunpack.c.h.b16 %v122
    %v584 = vunpack.c.l.b16 %v123
    %v585 = vunpack.c.h.b16 %v123
    %v586 = vunpack.c.l.b16 %v124
    %v587 = vunpack.c.h.b16 %v124
    %v588 = vunpack.c.l.b16 %v125
    %v589 = vunpack.c.h.b16 %v125
    %v590 = vunpack.c.l.b16 %v126
    %v591 = vunpack.c.h.b16 %v126
    %v592 = vunpack.c.l.b16 %v127
    %v593 = vunpack.c.h.b16 %v127
    %v594 = vunpack.c.l.b16 %v128
    %v595 = vunpack.c.h.b16 %v128
    %v596 = vunpack.c.l.b16 %v129
    %v597 = vunpack.c.h.b16 %v129
    %v598 = vunpack.c.l.b16 %v130
    %v599 = vunpack.c.h.b16 %v130
    %v600 = vunpack.c.l.b16 %v131
    %v601 = vunpack.c.h.b16 %v131
    %v602 = vunpack.c.l.b16 %v132
    %v603 = vunpack.c.h.b16 %v132
    %v604 = vunpack.c.l.b16 %v133
    %v605 = vunpack.c.h.b16 %v133
    %v606 = vunpack.c.l.b16 %v134
    %v607 = vunpack.c.h.b16 %v134
    %v608 = vunpack.c.l.b16 %v135
    %v609 = vunpack.c.h.b16 %v135
    %v610 = vunpack.c.l.b16 %v136
    %v611 = vunpack.c.h.b16 %v136
    %v612 = vunpack.c.l.b16 %v137
    %v613 = vunpack.c.h.b16 %v137
    %v614 = vunpack.c.l.b16 %v138
    %v615 = vunpack.c.h.b16 %v138
    %v616 = vunpack.c.l.b16 %v139
    %v617 = vunpack.c.h.b16 %v139
    %v618 = vunpack.c.l.b16 %v140
    %v619 = vunpack.c.h.b16 %v140
    %v620 = vunpack.c.l.b16 %v141
    %v621 = vunpack.c.h.b16 %v141
    %v622 = vunpack.c.l.b16 %v142
    %v623 = vunpack.c.h.b16 %v142
    %v624 = vunpack.c.l.b16 %v143
    %v625 = vunpack.c.h.b16 %v143
    %v626 = vunpack.c.l.b16 %v144
    %v627 = vunpack.c.h.b16 %v144
    %v628 = vunpack.c.l.b16 %v145
    %v629 = vunpack.c.h.b16 %v145
    %v630 = vunpack.c.l.b16 %v146
    %v631 = vunpack.c.h.b16 %v146
    %v632 = vunpack.c.l.b16 %v147
    %v633 = vunpack.c.h.b16 %v147
    %v634 = vunpack.c.l.b16 %v148
    %v635 = vunpack.c.h.b16 %v148
    %v636 = vunpack.c.l.b16 %v149
    %v637 = vunpack.c.h.b16 %v149
    %v638 = vunpack.c.l.b16 %v150
    %v639 = vunpack.c.h.b16 %v150
    %v640 = vunpack.c.l.b16 %v151
    %v641 = vunpack.c.h.b16 %v151
    %v642 = vunpack.c.l.b16 %v152
    %v643 = vunpack.c.h.b16 %v152
    %v644 = vunpack.c.l.b16 %v153
    %v645 = vunpack.c.h.b16 %v153
    %v646 = vunpack.c.l.b16 %v154
    %v647 = vunpack.c.h.b16 %v154
    %v648 = vunpack.c.l.b16 %v155
    %v649 = vunpack.c.h.b16 %v155
    %v650 = vunpack.c.l.b16 %v156
    %v651 = vunpack.c.h.b16 %v156
    %v652 = vunpack.c.l.b16 %v157
    %v653 = vunpack.c.h.b16 %v157
    %v654 = vunpack.c.l.b16 %v158
    %v655 = vunpack.c.h.b16 %v158
    %v656 = vunpack.c.l.b16 %v159
    %v657 = vunpack.c.h.b16 %v159
    %v658 = vunpack.c.l.b16 %v160
    %v659 = vunpack.c.h.b16 %v160
    %v660 = vunpack.c.l.b16 %v161
    %v661 = vunpack.c.h.b16 %v161
    %v662 = vunpack.c.l.b16 %v162
    %v663 = vunpack.c.h.b16 %v162
    %v664 = vunpack.c.l.b16 %v163
    %v665 = vunpack.c.h.b16 %v163
    %v666 = vunpack.c.l.b16 %v164
    %v667 = vunpack.c.h.b16 %v164
    %v668 = vunpack.c.l.b16 %v165
    %v669 = vunpack.c.h.b16 %v165
    %v670 = vunpack.c.l.b16 %v166
    %v671 = vunpack.c.h.b16 %v166
    %v672 = vunpack.c.l.b16 %v167
    %v673 = vunpack.c.h.b16 %v167
    %v674 = vunpack.c.l.b16 %v168
    %v675 = vunpack.c.h.b16 %v168
    %v676 = vunpack.c.l.b16 %v169
    %v677 = vunpack.c.h.b16 %v169
    %v678 = vunpack.c.l.b16 %v170
    %v679 = vunpack.c.h.b16 %v170
    %v680 = vunpack.c.l.b16 %v171
    %v681 = vunpack.c.h.b16 %v171
    %v682 = vunpack.c.l.b16 %v172
    %v683 = vunpack.c.h.b16 %v172
    %v684 = vunpack.c.l.b16 %v173
    %v685 = vunpack.c.h.b16 %v173
    %v686 = vunpack.c.l.b16 %v174
    %v687 = vunpack.c.h.b16 %v174
    %v688 = vunpack.c.l.b16 %v175
    %v689 = vunpack.c.h.b16 %v175
    %v690 = vunpack.c.l.b16 %v176
    %v691 = vunpack.c.h.b16 %v176
    %v692 = vunpack.c.l.b16 %v177
    %v693 = vunpack.c.h.b16 %v177
    %v694 = vunpack.c.l.b16 %v178
    %v695 = vunpack.c.h.b16 %v178
    %v696 = vunpack.c.l.b16 %v179
    %v697 = vunpack.c.h.b16 %v179
    %v698 = vunpack.c.l.b16 %v180
    %v699 = vunpack.c.h.b16 %v180
    %v700 = vunpack.c.l.b16 %v181
    %v701 = vunpack.c.h.b16 %v181
    %v702 = vunpack.c.l.b16 %v182
    %v703 = vunpack.c.h.b16 %v182
    %v704 = vunpack.c.l.b16 %v183
    %v705 = vunpack.c.h.b16 %v183
    %v706 = vunpack.c.l.b16 %v184
    %v707 = vunpack.c.h.b16 %v184
    %v708 = vunpack.c.l.b16 %v185
    %v709 = vunpack.c.h.b16 %v185
    %v710 = vunpack.c.l.b16 %v186
    %v711 = vunpack.c.h.b16 %v186
    %v712 = vunpack.c.l.b16 %v187
    %v713 = vunpack.c.h.b16 %v187
    %v714 = vunpack.c.l.b16 %v188
    %v715 = vunpack.c.h.b16 %v188
    %v716 = vunpack.c.l.b16 %v189
    %v717 = vunpack.c.h.b16 %v189
    %v718 = vunpack.c.l.b16 %v190
    %v719 = vunpack.c.h.b16 %v190
    %v720 = vunpack.c.l.b16 %v191
    %v721 = vunpack.c.h.b16 %v191
    %v722 = vunpack.c.l.b16 %v192
    %v723 = vunpack.c.h.b16 %v192
    %v724 = vunpack.c.l.b16 %v193
    %v725 = vunpack.c.h.b16 %v193
    %v726 = vunpack.c.l.b16 %v194
    %v727 = vunpack.c.h.b16 %v194
    %v728 = vunpack.c.l.b16 %v195
    %v729 = vunpack.c.h.b16 %v195
    %v730 = vunpack.c.l.b16 %v196
    %v731 = vunpack.c.h.b16 %v196
    %v732 = vunpack.c.l.b16 %v197
    %v733 = vunpack.c.h.b16 %v197
    %v734 = vunpack.c.l.b16 %v198
    %v735 = vunpack.c.h.b16 %v198
    %v736 = vunpack.c.l.b16 %v199
    %v737 = vunpack.c.h.b16 %v199
    %v738 = vunpack.c.l.b16 %v200
    %v739 = vunpack.c.h.b16 %v200
    %v740 = vunpack.c.l.b16 %v201
    %v741 = vunpack.c.h.b16 %v201
    %v742 = vunpack.c.l.b16 %v202
    %v743 = vunpack.c.h.b16 %v202
    %v744 = vunpack.c.l.b16 %v203
    %v745 = vunpack.c.h.b16 %v203
    %v746 = vunpack.c.l.b16 %v204
    %v747 = vunpack.c.h.b16 %v204
    %v748 = vunpack.c.l.b16 %v205
    %v749 = vunpack.c.h.b16 %v205
    %v750 = vunpack.c.l.b16 %v206
    %v751 = vunpack.c.h.b16 %v206
    %v752 = vunpack.c.l.b16 %v207
    %v753 = vunpack.c.h.b16 %v207
    %v754 = vunpack.c.l.b16 %v208
    %v755 = vunpack.c.h.b16 %v208
    %v756 = vunpack.c.l.b16 %v209
    %v757 = vunpack.c.h.b16 %v209
    %v758 = vunpack.c.l.b16 %v210
    %v759 = vunpack.c.h.b16 %v210
    %v760 = vunpack.c.l.b16 %v211
    %v761 = vunpack.c.h.b16 %v211
    %v762 = vunpack.c.l.b16 %v212
    %v763 = vunpack.c.h.b16 %v212
    %v764 = vunpack.c.l.b16 %v213
    %v765 = vunpack.c.h.b16 %v213
    %v766 = vunpack.c.l.b16 %v214
    %v767 = vunpack.c.h.b16 %v214
    %v768 = vunpack.c.l.b16 %v215
    %v769 = vunpack.c.h.b16 %v215
    %v770 = vunpack.c.l.b16 %v216
    %v771 = vunpack.c.h.b16 %v216
    %v772 = vunpack.c.l.b16 %v217
    %v773 = vunpack.c.h.b16 %v217
    %v774 = vunpack.c.l.b16 %v218
    %v775 = vunpack.c.h.b16 %v218
    %v776 = vunpack.c.l.b16 %v219
    %v777 = vunpack.c.h.b16 %v219
    %v778 = vunpack.c.l.b16 %v220
    %v779 = vunpack.c.h.b16 %v220
    %v780 = vunpack.c.l.b16 %v221
    %v781 = vunpack.c.h.b16 %v221
    %v782 = vunpack.c.l.b16 %v222
    %v783 = vunpack.c.h.b16 %v222
    %v784 = vunpack.c.l.b16 %v223
    %v785 = vunpack.c.h.b16 %v223
    %v786 = vunpack.c.l.b16 %v224
    %v787 = vunpack.c.h.b16 %v224
    %v788 = vunpack.c.l.b16 %v225
    %v789 = vunpack.c.h.b16 %v225
    %v790 = vunpack.c.l.b16 %v226
    %v791 = vunpack.c.h.b16 %v226
    %v792 = vunpack.c.l.b16 %v227
    %v793 = vunpack.c.h.b16 %v227
    %v794 = vunpack.c.l.b16 %v228
    %v795 = vunpack.c.h.b16 %v228
    %v796 = vunpack.c.l.b16 %v229
    %v797 = vunpack.c.h.b16 %v229
    %v798 = vunpack.c.l.b16 %v230
    %v799 = vunpack.c.h.b16 %v230
    %v800 = vunpack.c.l.b16 %v231
    %v801 = vunpack.c.h.b16 %v231
    %v802 = vunpack.c.l.b16 %v232
    %v803 = vunpack.c.h.b16 %v232
    %v804 = vunpack.c.l.b16 %v233
    %v805 = vunpack.c.h.b16 %v233
    %v806 = vunpack.c.l.b16 %v234
    %v807 = vunpack.c.h.b16 %v234
    %v808 = vunpack.c.l.b16 %v235
    %v809 = vunpack.c.h.b16 %v235
    %v810 = vunpack.c.l.b16 %v236
    %v811 = vunpack.c.h.b16 %v236
    %v812 = vunpack.c.l.b16 %v237
    %v813 = vunpack.c.h.b16 %v237
    %v814 = vunpack.c.l.b16 %v238
    %v815 = vunpack.c.h.b16 %v238
    %v816 = vunpack.c.l.b16 %v239
    %v817 = vunpack.c.h.b16 %v239
    %v818 = vunpack.c.l.b16 %v240
    %v819 = vunpack.c.h.b16 %v240
    %v820 = vunpack.c.l.b16 %v241
    %v821 = vunpack.c.h.b16 %v241
    %v822 = vunpack.c.l.b16 %v242
    %v823 = vunpack.c.h.b16 %v242
    %v824 = vunpack.c.l.b16 %v243
    %v825 = vunpack.c.h.b16 %v243
    %v826 = vunpack.c.l.b16 %v244
    %v827 = vunpack.c.h.b16 %v244
    %v828 = vunpack.c.l.b16 %v245
    %v829 = vunpack.c.h.b16 %v245
    %v830 = vunpack.c.l.b16 %v246
    %v831 = vunpack.c.h.b16 %v246
    %v832 = vunpack.c.l.b16 %v247
    %v833 = vunpack.c.h.b16 %v247
    %v834 = vunpack.c.l.b16 %v248
    %v835 = vunpack.c.h.b16 %v248
    %v836 = vunpack.c.l.b16 %v249
    %v837 = vunpack.c.h.b16 %v249
    %v838 = vunpack.c.l.b16 %v250
    %v839 = vunpack.c.h.b16 %v250
    %v840 = vunpack.c.l.b16 %v251
    %v841 = vunpack.c.h.b16 %v251
    %v842 = vunpack.c.l.b16 %v252
    %v843 = vunpack.c.h.b16 %v252
    %v844 = vunpack.c.l.b16 %v253
    %v845 = vunpack.c.h.b16 %v253
    %v846 = vunpack.c.l.b16 %v254
    %v847 = vunpack.c.h.b16 %v254
    %v848 = vunpack.c.l.b16 %v255
    %v849 = vunpack.c.h.b16 %v255
    %v850 = vunpack.c.l.b16 %v256
    %v851 = vunpack.c.h.b16 %v256
    %v852 = vunpack.c.l.b16 %v257
    %v853 = vunpack.c.h.b16 %v257
    %v854 = vunpack.c.l.b16 %v258
    %v855 = vunpack.c.h.b16 %v258
    %v856 = vunpack.c.l.b16 %v259
    %v857 = vunpack.c.h.b16 %v259
    %v858 = vunpack.c.l.b16 %v260
    %v859 = vunpack.c.h.b16 %v260
    %v860 = vunpack.c.l.b16 %v261
    %v861 = vunpack.c.h.b16 %v261
    %v862 = vunpack.c.l.b16 %v262
    %v863 = vunpack.c.h.b16 %v262
    %v864 = vunpack.c.l.b16 %v263
    %v865 = vunpack.c.h.b16 %v263
    %v866 = vunpack.c.l.b16 %v264
    %v867 = vunpack.c.h.b16 %v264
    %v868 = vunpack.c.l.b16 %v265
    %v869 = vunpack.c.h.b16 %v265
    %v870 = vunpack.c.l.b16 %v266
    %v871 = vunpack.c.h.b16 %v266
    %v872 = vunpack.c.l.b16 %v267
    %v873 = vunpack.c.h.b16 %v267
    %v874 = vunpack.c.l.b16 %v268
    %v875 = vunpack.c.h.b16 %v268
    %v876 = vunpack.c.l.b16 %v269
    %v877 = vunpack.c.h.b16 %v269
    %v878 = vunpack.c.l.b16 %v270
    %v879 = vunpack.c.h.b16 %v270
    %v880 = vunpack.c.l.b16 %v271
    %v881 = vunpack.c.h.b16 %v271
    %v882 = vpack.c.b16 %v494, %v490
    %v883 = vpack.c.b16 %v495, %v491
    %v884 = vpack.c.b16 %v496, %v492
    %v885 = vpack.c.b16 %v497, %v493
    %v886 = vpack.c.b16 %v502, %v498
    %v887 = vpack.c.b16 %v503, %v499
    %v888 = vpack.c.b16 %v504, %v500
    %v889 = vpack.c.b16 %v505, %v501
    %v890 = vpack.c.b16 %v510, %v506
    %v891 = vpack.c.b16 %v511, %v507
    %v892 = vpack.c.b16 %v512, %v508
    %v893 = vpack.c.b16 %v513, %v509
    %v894 = vpack.c.b16 %v518, %v514
    %v895 = vpack.c.b16 %v519, %v515
    %v896 = vpack.c.b16 %v520, %v516
    %v897 = vpack.c.b16 %v521, %v517
    %v898 = vpack.c.b16 %v526, %v522
    %v899 = vpack.c.b16 %v527, %v523
    %v900 = vpack.c.b16 %v528, %v524
    %v901 = vpack.c.b16 %v529, %v525
    %v902 = vpack.c.b16 %v534, %v530
    %v903 = vpack.c.b16 %v535, %v531
    %v904 = vpack.c.b16 %v536, %v532
    %v905 = vpack.c.b16 %v537, %v533
    %v906 = vpack.c.b16 %v542, %v538
    %v907 = vpack.c.b16 %v543, %v539
    %v908 = vpack.c.b16 %v544, %v540
    %v909 = vpack.c.b16 %v545, %v541
    %v910 = vpack.c.b16 %v550, %v546
    %v911 = vpack.c.b16 %v551, %v547
    %v912 = vpack.c.b16 %v552, %v548
    %v913 = vpack.c.b16 %v553, %v549
    %v914 = vpack.c.b16 %v558, %v554
    %v915 = vpack.c.b16 %v559, %v555
    %v916 = vpack.c.b16 %v560, %v556
    %v917 = vpack.c.b16 %v561, %v557
    %v918 = vpack.c.b16 %v566, %v562
    %v919 = vpack.c.b16 %v567, %v563
    %v920 = vpack.c.b16 %v568, %v564
    %v921 = vpack.c.b16 %v569, %v565
    %v922 = vpack.c.b16 %v574, %v570
    %v923 = vpack.c.b16 %v575, %v571
    %v924 = vpack.c.b16 %v576, %v572
    %v925 = vpack.c.b16 %v577, %v573
    %v926 = vpack.c.b16 %v582, %v578
    %v927 = vpack.c.b16 %v583, %v579
    %v928 = vpack.c.b16 %v584, %v580
    %v929 = vpack.c.b16 %v585, %v581
    %v930 = vpack.c.b16 %v590, %v586
    %v931 = vpack.c.b16 %v591, %v587
    %v932 = vpack.c.b16 %v592, %v588
    %v933 = vpack.c.b16 %v593, %v589
    %v934 = vpack.c.b16 %v598, %v594
    %v935 = vpack.c.b16 %v599, %v595
    %v936 = vpack.c.b16 %v600, %v596
    %v937 = vpack.c.b16 %v601, %v597
    %v938 = vpack.c.b16 %v606, %v602
    %v939 = vpack.c.b16 %v607, %v603
    %v940 = vpack.c.b16 %v608, %v604
    %v941 = vpack.c.b16 %v609, %v605
    %v942 = vpack.c.b16 %v614, %v610
    %v943 = vpack.c.b16 %v615, %v611
    %v944 = vpack.c.b16 %v616, %v612
    %v945 = vpack.c.b16 %v617, %v613
    %v946 = vpack.c.b16 %v622, %v618
    %v947 = vpack.c.b16 %v623, %v619
    %v948 = vpack.c.b16 %v624, %v620
    %v949 = vpack.c.b16 %v625, %v621
    %v950 = vpack.c.b16 %v630, %v626
    %v951 = vpack.c.b16 %v631, %v627
    %v952 = vpack.c.b16 %v632, %v628
    %v953 = vpack.c.b16 %v633, %v629
    %v954 = vpack.c.b16 %v638, %v634
    %v955 = vpack.c.b16 %v639, %v635
    %v956 = vpack.c.b16 %v640, %v636
    %v957 = vpack.c.b16 %v641, %v637
    %v958 = vpack.c.b16 %v646, %v642
    %v959 = vpack.c.b16 %v647, %v643
    %v960 = vpack.c.b16 %v648, %v644
    %v961 = vpack.c.b16 %v649, %v645
    %v962 = vpack.c.b16 %v654, %v650
    %v963 = vpack.c.b16 %v655, %v651
    %v964 = vpack.c.b16 %v656, %v652
    %v965 = vpack.c.b16 %v657, %v653
    %v966 = vpack.c.b16 %v662, %v658
    %v967 = vpack.c.b16 %v663, %v659
    %v968 = vpack.c.b16 %v664, %v660
    %v969 = vpack.c.b16 %v665, %v661
    %v970 = vpack.c.b16 %v670, %v666
    %v971 = vpack.c.b16 %v671, %v667
    %v972 = vpack.c.b16 %v672, %v668
    %v973 = vpack.c.b16 %v673, %v669
    %v974 = vpack.c.b16 %v678, %v674
    %v975 = vpack.c.b16 %v679, %v675
    %v976 = vpack.c.b16 %v680, %v676
    %v977 = vpack.c.b16 %v681, %v677
    %v978 = vpack.c.b16 %v686, %v682
    %v979 = vpack.c.b16 %v687, %v683
    %v980 = vpack.c.b16 %v688, %v684
    %v981 = vpack.c.b16 %v689, %v685
    %v982 = vpack.c.b16 %v694, %v690
    %v983 = vpack.c.b16 %v695, %v691
    %v984 = vpack.c.b16 %v696, %v692
    %v985 = vpack.c.b16 %v697, %v693
    %v986 = vpack.c.b16 %v702, %v698
    %v987 = vpack.c.b16 %v703, %v699
    %v988 = vpack.c.b16 %v704, %v700
    %v989 = vpack.c.b16 %v705, %v701
    %v990 = vpack.c.b16 %v710, %v706
    %v991 = vpack.c.b16 %v711, %v707
    %v992 = vpack.c.b16 %v712, %v708
    %v993 = vpack.c.b16 %v713, %v709
    %v994 = vpack.c.b16 %v718, %v714
    %v995 = vpack.c.b16 %v719, %v715
    %v996 = vpack.c.b16 %v720, %v716
    %v997 = vpack.c.b16 %v721, %v717
    %v998 = vpack.c.b16 %v726, %v722
    %v999 = vpack.c.b16 %v727, %v723
    %v1000 = vpack.c.b16 %v728, %v724
    %v1001 = vpack.c.b16 %v729, %v725
    %v1002 = vpack.c.b16 %v734, %v730
    %v1003 = vpack.c.b16 %v735, %v731
    %v1004 = vpack.c.b16 %v736, %v732
    %v1005 = vpack.c.b16 %v737, %v733
    %v1006 = vpack.c.b16 %v742, %v738
    %v1007 = vpack.c.b16 %v743, %v739
    %v1008 = vpack.c.b16 %v744, %v740
    %v1009 = vpack.c.b16 %v745, %v741
    %v1010 = vpack.c.b16 %v750, %v746
    %v1011 = vpack.c.b16 %v751, %v747
    %v1012 = vpack.c.b16 %v752, %v748
    %v1013 = vpack.c.b16 %v753, %v749
    %v1014 = vpack.c.b16 %v758, %v754
    %v1015 = vpack.c.b16 %v759, %v755
    %v1016 = vpack.c.b16 %v760, %v756
    %v1017 = vpack.c.b16 %v761, %v757
    %v1018 = vpack.c.b16 %v766, %v762
    %v1019 = vpack.c.b16 %v767, %v763
    %v1020 = vpack.c.b16 %v768, %v764
    %v1021 = vpack.c.b16 %v769, %v765
    %v1022 = vpack.c.b16 %v774, %v770
    %v1023 = vpack.c.b16 %v775, %v771
    %v1024 = vpack.c.b16 %v776, %v772
    %v1025 = vpack.c.b16 %v777, %v773
    %v1026 = vpack.c.b16 %v782, %v778
    %v1027 = vpack.c.b16 %v783, %v779
    %v1028 = vpack.c.b16 %v784, %v780
    %v1029 = vpack.c.b16 %v785, %v781
    %v1030 = vpack.c.b16 %v790, %v786
    %v1031 = vpack.c.b16 %v791, %v787
    %v1032 = vpack.c.b16 %v792, %v788
    %v1033 = vpack.c.b16 %v793, %v789
    %v1034 = vpack.c.b16 %v798, %v794
    %v1035 = vpack.c.b16 %v799, %v795
    %v1036 = vpack.c.b16 %v800, %v796
    %v1037 = vpack.c.b16 %v801, %v797
    %v1038 = vpack.c.b16 %v806, %v802
    %v1039 = vpack.c.b16 %v807, %v803
    %v1040 = vpack.c.b16 %v808, %v804
    %v1041 = vpack.c.b16 %v809, %v805
    %v1042 = vpack.c.b16 %v814, %v810
    %v1043 = vpack.c.b16 %v815, %v811
    %v1044 = vpack.c.b16 %v816, %v812
    %v1045 = vpack.c.b16 %v817, %v813
    %v1046 = vpack.c.b16 %v822, %v818
    %v1047 = vpack.c.b16 %v823, %v819
    %v1048 = vpack.c.b16 %v824, %v820
    %v1049 = vpack.c.b16 %v825, %v821
    %v1050 = vpack.c.b16 %v830, %v826
    %v1051 = vpack.c.b16 %v831, %v827
    %v1052 = vpack.c.b16 %v832, %v828
    %v1053 = vpack.c.b16 %v833, %v829
    %v1054 = vpack.c.b16 %v838, %v834
    %v1055 = vpack.c.b16 %v839, %v835
    %v1056 = vpack.c.b16 %v840, %v836
    %v1057 = vpack.c.b16 %v841, %v837
    %v1058 = vpack.c.b16 %v846, %v842
    %v1059 = vpack.c.b16 %v847, %v843
    %v1060 = vpack.c.b16 %v848, %v844
    %v1061 = vpack.c.b16 %v849, %v845
    %v1062 = vpack.c.b16 %v854, %v850
    %v1063 = vpack.c.b16 %v855, %v851
    %v1064 = vpack.c.b16 %v856, %v852
    %v1065 = vpack.c.b16 %v857, %v853
    %v1066 = vpack.c.b16 %v862, %v858
    %v1067 = vpack.c.b16 %v863, %v859
    %v1068 = vpack.c.b16 %v864, %v860
    %v1069 = vpack.c.b16 %v865, %v861
    %v1070 = vpack.c.b16 %v870, %v866
    %v1071 = vpack.c.b16 %v871, %v867
    %v1072 = vpack.c.b16 %v872, %v868
    %v1073 = vpack.c.b16 %v873, %v869
    %v1074 = vpack.c.b16 %v878, %v874
    %v1075 = vpack.c.b16 %v879, %v875
    %v1076 = vpack.c.b16 %v880, %v876
    %v1077 = vpack.c.b16 %v881, %v877
    %vm1274 = vcmask 130048
    %v1276 = vsel %vm1274, %v75, 0
    %1278 = vmatprep.subr.bf16.mxu0 %v883
    %1279 = vmatpush1.bf16.msra.mxu0 %v882
    %1280 = vmatprep.subr.bf16.mxu0 %v887
    %1281 = vmatpush1.bf16.msra.mxu0 %v886
    %1282 = vmatprep.subr.bf16.mxu0 %v891
    %1283 = vmatpush1.bf16.msra.mxu0 %v890
    %1284 = vmatprep.subr.bf16.mxu0 %v895
    %1285 = vmatpush1.bf16.msra.mxu0 %v894
    %1286 = vmatprep.subr.bf16.mxu0 %v899
    %1287 = vmatpush1.bf16.msra.mxu0 %v898
    %1288 = vmatprep.subr.bf16.mxu0 %v903
    %1289 = vmatpush1.bf16.msra.mxu0 %v902
    %1290 = vmatprep.subr.bf16.mxu0 %v907
    %1291 = vmatpush1.bf16.msra.mxu0 %v906
    %1292 = vmatprep.subr.bf16.mxu0 %v911
    %1293 = vmatpush1.bf16.msra.mxu0 %v910
    %1294 = vmatprep.subr.bf16.mxu0 %v915
    %1295 = vmatpush1.bf16.msra.mxu0 %v914
    %1296 = vmatprep.subr.bf16.mxu0 %v919
    %1297 = vmatpush1.bf16.msra.mxu0 %v918
    %1298 = vmatprep.subr.bf16.mxu0 %v923
    %1299 = vmatpush1.bf16.msra.mxu0 %v922
    %1300 = vmatprep.subr.bf16.mxu0 %v927
    %1301 = vmatpush1.bf16.msra.mxu0 %v926
    %1302 = vmatprep.subr.bf16.mxu0 %v931
    %1303 = vmatpush1.bf16.msra.mxu0 %v930
    %1304 = vmatprep.subr.bf16.mxu0 %v935
    %1305 = vmatpush1.bf16.msra.mxu0 %v934
    %1306 = vmatprep.subr.bf16.mxu0 %v939
    %1307 = vmatpush1.bf16.msra.mxu0 %v938
    %1308 = vmatprep.subr.bf16.mxu0 %v943
    %1309 = vmatpush1.bf16.msra.mxu0 %v942
    %1310 = vmatprep.mubr.bf16.mxu0 %v70
    %1311 = vmatmul.mubr.bf16.gmra.mrb[0].mxu0 %v69
    %v1312 = vpop.f32.mrb[0].mxu0
    %v1313 = vadd.f32 %v277, %v1312
    %v1314 = vpop.f32.mrb[0].mxu0
    %v1315 = vadd.f32 %v281, %v1314
    %v1316 = vpop.f32.mrb[0].mxu0
    %v1317 = vpop.f32.mrb[0].mxu0
    %1318 = vdwg.mxu0
    %1319 = vmatprep.subr.bf16.mxu0 %v947
    %1320 = vmatpush1.bf16.msra.mxu0 %v946
    %1321 = vmatprep.subr.bf16.mxu0 %v951
    %1322 = vmatpush1.bf16.msra.mxu0 %v950
    %1323 = vmatprep.subr.bf16.mxu0 %v955
    %1324 = vmatpush1.bf16.msra.mxu0 %v954
    %1325 = vmatprep.subr.bf16.mxu0 %v959
    %1326 = vmatpush1.bf16.msra.mxu0 %v958
    %1327 = vmatprep.subr.bf16.mxu0 %v963
    %1328 = vmatpush1.bf16.msra.mxu0 %v962
    %1329 = vmatprep.subr.bf16.mxu0 %v967
    %1330 = vmatpush1.bf16.msra.mxu0 %v966
    %1331 = vmatprep.subr.bf16.mxu0 %v971
    %1332 = vmatpush1.bf16.msra.mxu0 %v970
    %1333 = vmatprep.subr.bf16.mxu0 %v975
    %1334 = vmatpush1.bf16.msra.mxu0 %v974
    %1335 = vmatprep.subr.bf16.mxu0 %v979
    %1336 = vmatpush1.bf16.msra.mxu0 %v978
    %1337 = vmatprep.subr.bf16.mxu0 %v983
    %1338 = vmatpush1.bf16.msra.mxu0 %v982
    %1339 = vmatprep.subr.bf16.mxu0 %v987
    %1340 = vmatpush1.bf16.msra.mxu0 %v986
    %1341 = vmatprep.subr.bf16.mxu0 %v991
    %1342 = vmatpush1.bf16.msra.mxu0 %v990
    %1343 = vmatprep.subr.bf16.mxu0 %v995
    %1344 = vmatpush1.bf16.msra.mxu0 %v994
    %1345 = vmatprep.subr.bf16.mxu0 %v999
    %1346 = vmatpush1.bf16.msra.mxu0 %v998
    %1347 = vmatprep.subr.bf16.mxu0 %v1003
    %1348 = vmatpush1.bf16.msra.mxu0 %v1002
    %1349 = vmatprep.subr.bf16.mxu0 %v1007
    %1350 = vmatpush1.bf16.msra.mxu0 %v1006
    %1351 = vmatprep.mubr.bf16.mxu0 %v72
    %1352 = vmatmul.mubr.bf16.gmra.mrb[0].mxu0 %v71
    %v1353 = vpop.f32.mrb[0].mxu0
    %v1354 = vadd.f32 %v1313, %v1353
    %v1355 = vpop.f32.mrb[0].mxu0
    %v1356 = vadd.f32 %v1315, %v1355
    %v1357 = vpop.f32.mrb[0].mxu0
    %v1358 = vpop.f32.mrb[0].mxu0
    %1359 = vdwg.mxu0
    %1360 = vmatprep.subr.bf16.mxu0 %v1011
    %1361 = vmatpush1.bf16.msra.mxu0 %v1010
    %1362 = vmatprep.subr.bf16.mxu0 %v1015
    %1363 = vmatpush1.bf16.msra.mxu0 %v1014
    %1364 = vmatprep.subr.bf16.mxu0 %v1019
    %1365 = vmatpush1.bf16.msra.mxu0 %v1018
    %1366 = vmatprep.subr.bf16.mxu0 %v1023
    %1367 = vmatpush1.bf16.msra.mxu0 %v1022
    %1368 = vmatprep.subr.bf16.mxu0 %v1027
    %1369 = vmatpush1.bf16.msra.mxu0 %v1026
    %1370 = vmatprep.subr.bf16.mxu0 %v1031
    %1371 = vmatpush1.bf16.msra.mxu0 %v1030
    %1372 = vmatprep.subr.bf16.mxu0 %v1035
    %1373 = vmatpush1.bf16.msra.mxu0 %v1034
    %1374 = vmatprep.subr.bf16.mxu0 %v1039
    %1375 = vmatpush1.bf16.msra.mxu0 %v1038
    %1376 = vmatprep.subr.bf16.mxu0 %v1043
    %1377 = vmatpush1.bf16.msra.mxu0 %v1042
    %1378 = vmatprep.subr.bf16.mxu0 %v1047
    %1379 = vmatpush1.bf16.msra.mxu0 %v1046
    %1380 = vmatprep.subr.bf16.mxu0 %v1051
    %1381 = vmatpush1.bf16.msra.mxu0 %v1050
    %1382 = vmatprep.subr.bf16.mxu0 %v1055
    %1383 = vmatpush1.bf16.msra.mxu0 %v1054
    %1384 = vmatprep.subr.bf16.mxu0 %v1059
    %1385 = vmatpush1.bf16.msra.mxu0 %v1058
    %1386 = vmatprep.subr.bf16.mxu0 %v1063
    %1387 = vmatpush1.bf16.msra.mxu0 %v1062
    %1388 = vmatprep.subr.bf16.mxu0 %v1067
    %1389 = vmatpush1.bf16.msra.mxu0 %v1066
    %1390 = vmatprep.subr.bf16.mxu0 %v1071
    %1391 = vmatpush1.bf16.msra.mxu0 %v1070
    %1392 = vmatprep.mubr.bf16.mxu0 %v74
    %1393 = vmatmul.mubr.bf16.gmra.mrb[0].mxu0 %v73
    %v1394 = vpop.f32.mrb[0].mxu0
    %v1395 = vadd.f32 %v1354, %v1394
    %v1396 = vpop.f32.mrb[0].mxu0
    %v1397 = vadd.f32 %v1356, %v1396
    %v1398 = vpop.f32.mrb[0].mxu0
    %v1399 = vpop.f32.mrb[0].mxu0
    %1400 = vdwg.mxu0
    %1401 = vmatprep.subr.bf16.mxu0 %v1075
    %1402 = vmatpush1.bf16.msra.mxu0 %v1074
    %1403 = vmatprep.subr.bf16.mxu0 0
    %1404 = vmatpush1.bf16.msra.mxu0 0
    %1405 = vmatprep.subr.bf16.mxu0 0
    %1406 = vmatpush1.bf16.msra.mxu0 0
    %1407 = vmatprep.subr.bf16.mxu0 0
    %1408 = vmatpush1.bf16.msra.mxu0 0
    %1409 = vmatprep.subr.bf16.mxu0 0
    %1410 = vmatpush1.bf16.msra.mxu0 0
    %1411 = vmatprep.subr.bf16.mxu0 0
    %1412 = vmatpush1.bf16.msra.mxu0 0
    %1413 = vmatprep.subr.bf16.mxu0 0
    %1414 = vmatpush1.bf16.msra.mxu0 0
    %1415 = vmatprep.subr.bf16.mxu0 0
    %1416 = vmatpush1.bf16.msra.mxu0 0
    %1417 = vmatprep.subr.bf16.mxu0 0
    %1418 = vmatpush1.bf16.msra.mxu0 0
    %1419 = vmatprep.subr.bf16.mxu0 0
    %1420 = vmatpush1.bf16.msra.mxu0 0
    %1421 = vmatprep.subr.bf16.mxu0 0
    %1422 = vmatpush1.bf16.msra.mxu0 0
    %1423 = vmatprep.subr.bf16.mxu0 0
    %1424 = vmatpush1.bf16.msra.mxu0 0
    %1425 = vmatprep.subr.bf16.mxu0 0
    %1426 = vmatpush1.bf16.msra.mxu0 0
    %1427 = vmatprep.subr.bf16.mxu0 0
    %1428 = vmatpush1.bf16.msra.mxu0 0
    %1429 = vmatprep.subr.bf16.mxu0 0
    %1430 = vmatpush1.bf16.msra.mxu0 0
    %1431 = vmatprep.subr.bf16.mxu0 0
    %1432 = vmatpush1.bf16.msra.mxu0 0
    %1433 = vmatprep.mubr.bf16.mxu0 0
    %1434 = vmatmul.mubr.bf16.gmra.mrb[0].mxu0 %v1276
    %v1435 = vpop.f32.mrb[0].mxu0
    %v1436 = vadd.f32 %v1395, %v1435
    %v1437 = vpop.f32.mrb[0].mxu0
    %v1438 = vadd.f32 %v1397, %v1437
    %v1439 = vpop.f32.mrb[0].mxu0
    %v1440 = vpop.f32.mrb[0].mxu0
    %1441 = vdwg.mxu0
    %1442 = vmatprep.subr.bf16.mxu0 %v885
    %1443 = vmatpush1.bf16.msra.mxu0 %v884
    %1444 = vmatprep.subr.bf16.mxu0 %v889
    %1445 = vmatpush1.bf16.msra.mxu0 %v888
    %1446 = vmatprep.subr.bf16.mxu0 %v893
    %1447 = vmatpush1.bf16.msra.mxu0 %v892
    %1448 = vmatprep.subr.bf16.mxu0 %v897
    %1449 = vmatpush1.bf16.msra.mxu0 %v896
    %1450 = vmatprep.subr.bf16.mxu0 %v901
    %1451 = vmatpush1.bf16.msra.mxu0 %v900
    %1452 = vmatprep.subr.bf16.mxu0 %v905
    %1453 = vmatpush1.bf16.msra.mxu0 %v904
    %1454 = vmatprep.subr.bf16.mxu0 %v909
    %1455 = vmatpush1.bf16.msra.mxu0 %v908
    %1456 = vmatprep.subr.bf16.mxu0 %v913
    %1457 = vmatpush1.bf16.msra.mxu0 %v912
    %1458 = vmatprep.subr.bf16.mxu0 %v917
    %1459 = vmatpush1.bf16.msra.mxu0 %v916
    %1460 = vmatprep.subr.bf16.mxu0 %v921
    %1461 = vmatpush1.bf16.msra.mxu0 %v920
    %1462 = vmatprep.subr.bf16.mxu0 %v925
    %1463 = vmatpush1.bf16.msra.mxu0 %v924
    %1464 = vmatprep.subr.bf16.mxu0 %v929
    %1465 = vmatpush1.bf16.msra.mxu0 %v928
    %1466 = vmatprep.subr.bf16.mxu0 %v933
    %1467 = vmatpush1.bf16.msra.mxu0 %v932
    %1468 = vmatprep.subr.bf16.mxu0 %v937
    %1469 = vmatpush1.bf16.msra.mxu0 %v936
    %1470 = vmatprep.subr.bf16.mxu0 %v941
    %1471 = vmatpush1.bf16.msra.mxu0 %v940
    %1472 = vmatprep.subr.bf16.mxu0 %v945
    %1473 = vmatpush1.bf16.msra.mxu0 %v944
    %1474 = vmatprep.mubr.bf16.mxu0 %v70
    %1475 = vmatmul.mubr.bf16.gmra.mrb[0].mxu0 %v69
    %v1476 = vpop.f32.mrb[0].mxu0
    %v1477 = vadd.f32 %v285, %v1476
    %v1478 = vpop.f32.mrb[0].mxu0
    %v1479 = vadd.f32 %v289, %v1478
    %v1480 = vpop.f32.mrb[0].mxu0
    %v1481 = vpop.f32.mrb[0].mxu0
    %1482 = vdwg.mxu0
    %1483 = vmatprep.subr.bf16.mxu0 %v949
    %1484 = vmatpush1.bf16.msra.mxu0 %v948
    %1485 = vmatprep.subr.bf16.mxu0 %v953
    %1486 = vmatpush1.bf16.msra.mxu0 %v952
    %1487 = vmatprep.subr.bf16.mxu0 %v957
    %1488 = vmatpush1.bf16.msra.mxu0 %v956
    %1489 = vmatprep.subr.bf16.mxu0 %v961
    %1490 = vmatpush1.bf16.msra.mxu0 %v960
    %1491 = vmatprep.subr.bf16.mxu0 %v965
    %1492 = vmatpush1.bf16.msra.mxu0 %v964
    %1493 = vmatprep.subr.bf16.mxu0 %v969
    %1494 = vmatpush1.bf16.msra.mxu0 %v968
    %1495 = vmatprep.subr.bf16.mxu0 %v973
    %1496 = vmatpush1.bf16.msra.mxu0 %v972
    %1497 = vmatprep.subr.bf16.mxu0 %v977
    %1498 = vmatpush1.bf16.msra.mxu0 %v976
    %1499 = vmatprep.subr.bf16.mxu0 %v981
    %1500 = vmatpush1.bf16.msra.mxu0 %v980
    %1501 = vmatprep.subr.bf16.mxu0 %v985
    %1502 = vmatpush1.bf16.msra.mxu0 %v984
    %1503 = vmatprep.subr.bf16.mxu0 %v989
    %1504 = vmatpush1.bf16.msra.mxu0 %v988
    %1505 = vmatprep.subr.bf16.mxu0 %v993
    %1506 = vmatpush1.bf16.msra.mxu0 %v992
    %1507 = vmatprep.subr.bf16.mxu0 %v997
    %1508 = vmatpush1.bf16.msra.mxu0 %v996
    %1509 = vmatprep.subr.bf16.mxu0 %v1001
    %1510 = vmatpush1.bf16.msra.mxu0 %v1000
    %1511 = vmatprep.subr.bf16.mxu0 %v1005
    %1512 = vmatpush1.bf16.msra.mxu0 %v1004
    %1513 = vmatprep.subr.bf16.mxu0 %v1009
    %1514 = vmatpush1.bf16.msra.mxu0 %v1008
    %1515 = vmatprep.mubr.bf16.mxu0 %v72
    %1516 = vmatmul.mubr.bf16.gmra.mrb[0].mxu0 %v71
    %v1517 = vpop.f32.mrb[0].mxu0
    %v1518 = vadd.f32 %v1477, %v1517
    %v1519 = vpop.f32.mrb[0].mxu0
    %v1520 = vadd.f32 %v1479, %v1519
    %v1521 = vpop.f32.mrb[0].mxu0
    %v1522 = vpop.f32.mrb[0].mxu0
    %1523 = vdwg.mxu0
    %1524 = vmatprep.subr.bf16.mxu0 %v1013
    %1525 = vmatpush1.bf16.msra.mxu0 %v1012
    %1526 = vmatprep.subr.bf16.mxu0 %v1017
    %1527 = vmatpush1.bf16.msra.mxu0 %v1016
    %1528 = vmatprep.subr.bf16.mxu0 %v1021
    %1529 = vmatpush1.bf16.msra.mxu0 %v1020
    %1530 = vmatprep.subr.bf16.mxu0 %v1025
    %1531 = vmatpush1.bf16.msra.mxu0 %v1024
    %1532 = vmatprep.subr.bf16.mxu0 %v1029
    %1533 = vmatpush1.bf16.msra.mxu0 %v1028
    %1534 = vmatprep.subr.bf16.mxu0 %v1033
    %1535 = vmatpush1.bf16.msra.mxu0 %v1032
    %1536 = vmatprep.subr.bf16.mxu0 %v1037
    %1537 = vmatpush1.bf16.msra.mxu0 %v1036
    %1538 = vmatprep.subr.bf16.mxu0 %v1041
    %1539 = vmatpush1.bf16.msra.mxu0 %v1040
    %1540 = vmatprep.subr.bf16.mxu0 %v1045
    %1541 = vmatpush1.bf16.msra.mxu0 %v1044
    %1542 = vmatprep.subr.bf16.mxu0 %v1049
    %1543 = vmatpush1.bf16.msra.mxu0 %v1048
    %1544 = vmatprep.subr.bf16.mxu0 %v1053
    %1545 = vmatpush1.bf16.msra.mxu0 %v1052
    %1546 = vmatprep.subr.bf16.mxu0 %v1057
    %1547 = vmatpush1.bf16.msra.mxu0 %v1056
    %1548 = vmatprep.subr.bf16.mxu0 %v1061
    %1549 = vmatpush1.bf16.msra.mxu0 %v1060
    %1550 = vmatprep.subr.bf16.mxu0 %v1065
    %1551 = vmatpush1.bf16.msra.mxu0 %v1064
    %1552 = vmatprep.subr.bf16.mxu0 %v1069
    %1553 = vmatpush1.bf16.msra.mxu0 %v1068
    %1554 = vmatprep.subr.bf16.mxu0 %v1073
    %1555 = vmatpush1.bf16.msra.mxu0 %v1072
    %1556 = vmatprep.mubr.bf16.mxu0 %v74
    %1557 = vmatmul.mubr.bf16.gmra.mrb[0].mxu0 %v73
    %v1558 = vpop.f32.mrb[0].mxu0
    %v1559 = vadd.f32 %v1518, %v1558
    %v1560 = vpop.f32.mrb[0].mxu0
    %v1561 = vadd.f32 %v1520, %v1560
    %v1562 = vpop.f32.mrb[0].mxu0
    %v1563 = vpop.f32.mrb[0].mxu0
    %1564 = vdwg.mxu0
    %1565 = vmatprep.subr.bf16.mxu0 %v1077
    %1566 = vmatpush1.bf16.msra.mxu0 %v1076
    %1567 = vmatprep.subr.bf16.mxu0 0
    %1568 = vmatpush1.bf16.msra.mxu0 0
    %1569 = vmatprep.subr.bf16.mxu0 0
    %1570 = vmatpush1.bf16.msra.mxu0 0
    %1571 = vmatprep.subr.bf16.mxu0 0
    %1572 = vmatpush1.bf16.msra.mxu0 0
    %1573 = vmatprep.subr.bf16.mxu0 0
    %1574 = vmatpush1.bf16.msra.mxu0 0
    %1575 = vmatprep.subr.bf16.mxu0 0
    %1576 = vmatpush1.bf16.msra.mxu0 0
    %1577 = vmatprep.subr.bf16.mxu0 0
    %1578 = vmatpush1.bf16.msra.mxu0 0
    %1579 = vmatprep.subr.bf16.mxu0 0
    %1580 = vmatpush1.bf16.msra.mxu0 0
    %1581 = vmatprep.subr.bf16.mxu0 0
    %1582 = vmatpush1.bf16.msra.mxu0 0
    %1583 = vmatprep.subr.bf16.mxu0 0
    %1584 = vmatpush1.bf16.msra.mxu0 0
    %1585 = vmatprep.subr.bf16.mxu0 0
    %1586 = vmatpush1.bf16.msra.mxu0 0
    %1587 = vmatprep.subr.bf16.mxu0 0
    %1588 = vmatpush1.bf16.msra.mxu0 0
    %1589 = vmatprep.subr.bf16.mxu0 0
    %1590 = vmatpush1.bf16.msra.mxu0 0
    %1591 = vmatprep.subr.bf16.mxu0 0
    %1592 = vmatpush1.bf16.msra.mxu0 0
    %1593 = vmatprep.subr.bf16.mxu0 0
    %1594 = vmatpush1.bf16.msra.mxu0 0
    %1595 = vmatprep.subr.bf16.mxu0 0
    %1596 = vmatpush1.bf16.msra.mxu0 0
    %1597 = vmatprep.mubr.bf16.mxu0 0
    %1598 = vmatmul.mubr.bf16.gmra.mrb[0].mxu0 %v1276
    %v1599 = vpop.f32.mrb[0].mxu0
    %v1600 = vadd.f32 %v1559, %v1599
    %v1601 = vpop.f32.mrb[0].mxu0
    %v1602 = vadd.f32 %v1561, %v1601
    %v1603 = vpop.f32.mrb[0].mxu0
    %v1604 = vpop.f32.mrb[0].mxu0
    %1605 = vdwg.mxu0
    %v1606 = vmax.f32 %v1436, 0.0
    %v1607 = vmax.f32 %v1438, 0.0
    %v1608 = vmax.f32 %v1600, 0.0
    %v1609 = vmax.f32 %v1602, 0.0
    %v1610 = vpack.c.bf16 %v1606, %v1606
    %v1611 = vpack.c.bf16 %v1607, %v1607
    %v1612 = vpack.c.bf16 %v1608, %v1608
    %v1613 = vpack.c.bf16 %v1609, %v1609
    %v1614 = vld [vmem:[%s3] sm:$0xff]
    %v1615 = vld [vmem:[%s3 + $0x8] sm:$0xff]
    %v1616 = vld [vmem:[%s3 + $0x10] sm:$0xff]
    %v1617 = vld [vmem:[%s3 + $0x18] sm:$0xff]
    %v1618 = vld [vmem:[%s3 + $0x20] sm:$0xff]
    %v1619 = vld [vmem:[%s3 + $0x28] sm:$0xff]
    %v1620 = vld [vmem:[%s3 + $0x30] sm:$0xff]
    %v1621 = vld [vmem:[%s3 + $0x38] sm:$0xff]
    %v1622 = vld [vmem:[%s3 + $0x40] sm:$0xff]
    %v1623 = vld [vmem:[%s3 + $0x48] sm:$0xff]
    %v1624 = vld [vmem:[%s3 + $0x50] sm:$0xff]
    %v1625 = vld [vmem:[%s3 + $0x58] sm:$0xff]
    %v1626 = vld [vmem:[%s3 + $0x60] sm:$0xff]
    %v1627 = vld [vmem:[%s3 + $0x68] sm:$0xff]
    %v1628 = vld [vmem:[%s3 + $0x70] sm:$0xff]
    %v1629 = vld [vmem:[%s3 + $0x78] sm:$0xff]
    %v1630 = vld [vmem:[%s3 + $0x80] sm:$0xff]
    %v1631 = vld [vmem:[%s3 + $0x88] sm:$0xff]
    %v1632 = vld [vmem:[%s3 + $0x90] sm:$0xff]
    %v1633 = vld [vmem:[%s3 + $0x98] sm:$0xff]
    %v1634 = vld [vmem:[%s3 + $0xa0] sm:$0xff]
    %v1635 = vld [vmem:[%s3 + $0xa8] sm:$0xff]
    %v1636 = vld [vmem:[%s3 + $0xb0] sm:$0xff]
    %v1637 = vld [vmem:[%s3 + $0xb8] sm:$0xff]
    %v1638 = vld [vmem:[%s3 + $0xc0] sm:$0xff]
    %v1639 = vld [vmem:[%s3 + $0xc8] sm:$0xff]
    %v1640 = vld [vmem:[%s3 + $0xd0] sm:$0xff]
    %v1641 = vld [vmem:[%s3 + $0xd8] sm:$0xff]
    %v1642 = vld [vmem:[%s3 + $0xe0] sm:$0xff]
    %v1643 = vld [vmem:[%s3 + $0xe8] sm:$0xff]
    %v1644 = vld [vmem:[%s3 + $0xf0] sm:$0xff]
    %v1645 = vld [vmem:[%s3 + $0xf8] sm:$0xff]
    %v1646 = vld [vmem:[%s3 + $0x100] sm:$0xff]
    %v1647 = vld [vmem:[%s3 + $0x108] sm:$0xff]
    %v1648 = vld [vmem:[%s3 + $0x110] sm:$0xff]
    %v1649 = vld [vmem:[%s3 + $0x118] sm:$0xff]
    %v1650 = vld [vmem:[%s3 + $0x120] sm:$0xff]
    %v1651 = vld [vmem:[%s3 + $0x128] sm:$0xff]
    %v1652 = vld [vmem:[%s3 + $0x130] sm:$0xff]
    %v1653 = vld [vmem:[%s3 + $0x138] sm:$0xff]
    %v1654 = vld [vmem:[%s3 + $0x140] sm:$0xff]
    %v1655 = vld [vmem:[%s3 + $0x148] sm:$0xff]
    %v1656 = vld [vmem:[%s3 + $0x150] sm:$0xff]
    %v1657 = vld [vmem:[%s3 + $0x158] sm:$0xff]
    %v1658 = vld [vmem:[%s3 + $0x160] sm:$0xff]
    %v1659 = vld [vmem:[%s3 + $0x168] sm:$0xff]
    %v1660 = vld [vmem:[%s3 + $0x170] sm:$0xff]
    %v1661 = vld [vmem:[%s3 + $0x178] sm:$0xff]
    %v1662 = vld [vmem:[%s3 + $0x180] sm:$0xff]
    %v1663 = vld [vmem:[%s3 + $0x188] sm:$0xff]
    %v1664 = vld [vmem:[%s3 + $0x190] sm:$0xff]
    %v1665 = vld [vmem:[%s3 + $0x198] sm:$0xff]
    %v1666 = vld [vmem:[%s3 + $0x1a0] sm:$0xff]
    %v1667 = vld [vmem:[%s3 + $0x1a8] sm:$0xff]
    %v1668 = vld [vmem:[%s3 + $0x1b0] sm:$0xff]
    %v1669 = vld [vmem:[%s3 + $0x1b8] sm:$0xff]
    %v1670 = vld [vmem:[%s3 + $0x1c0] sm:$0xff]
    %v1671 = vld [vmem:[%s3 + $0x1c8] sm:$0xff]
    %v1672 = vld [vmem:[%s3 + $0x1d0] sm:$0xff]
    %v1673 = vld [vmem:[%s3 + $0x1d8] sm:$0xff]
    %v1674 = vld [vmem:[%s3 + $0x1e0] sm:$0xff]
    %v1675 = vld [vmem:[%s3 + $0x1e8] sm:$0xff]
    %v1676 = vld [vmem:[%s3 + $0x1f0] sm:$0xff]
    %v1677 = vld [vmem:[%s3 + $0x1f8] sm:$0xff]
    %v1678 = vld [vmem:[%s4] sm:$0x3]
    %v1680 = vlaneseq
    %v1681 = vshrl.u32 %v1680, 7
    %v1682 = vsub.s32 0, %v1681
    %v1683 = vrot.slane %v1678, %v1682
    %v1684 = vlaneseq
    %v1685 = vshrl.u32 %v1684, 7
    %v1686 = vsub.s32 1, %v1685
    %v1687 = vrot.slane %v1678, %v1686
    %v1754 = vunpack.c.l.b16 %v1614
    %v1755 = vunpack.c.h.b16 %v1614
    %v1756 = vunpack.c.l.b16 %v1615
    %v1757 = vunpack.c.h.b16 %v1615
    %v1758 = vunpack.c.l.b16 %v1616
    %v1759 = vunpack.c.h.b16 %v1616
    %v1760 = vunpack.c.l.b16 %v1617
    %v1761 = vunpack.c.h.b16 %v1617
    %v1762 = vunpack.c.l.b16 %v1618
    %v1763 = vunpack.c.h.b16 %v1618
    %v1764 = vunpack.c.l.b16 %v1619
    %v1765 = vunpack.c.h.b16 %v1619
    %v1766 = vunpack.c.l.b16 %v1620
    %v1767 = vunpack.c.h.b16 %v1620
    %v1768 = vunpack.c.l.b16 %v1621
    %v1769 = vunpack.c.h.b16 %v1621
    %v1770 = vunpack.c.l.b16 %v1622
    %v1771 = vunpack.c.h.b16 %v1622
    %v1772 = vunpack.c.l.b16 %v1623
    %v1773 = vunpack.c.h.b16 %v1623
    %v1774 = vunpack.c.l.b16 %v1624
    %v1775 = vunpack.c.h.b16 %v1624
    %v1776 = vunpack.c.l.b16 %v1625
    %v1777 = vunpack.c.h.b16 %v1625
    %v1778 = vunpack.c.l.b16 %v1626
    %v1779 = vunpack.c.h.b16 %v1626
    %v1780 = vunpack.c.l.b16 %v1627
    %v1781 = vunpack.c.h.b16 %v1627
    %v1782 = vunpack.c.l.b16 %v1628
    %v1783 = vunpack.c.h.b16 %v1628
    %v1784 = vunpack.c.l.b16 %v1629
    %v1785 = vunpack.c.h.b16 %v1629
    %v1786 = vunpack.c.l.b16 %v1630
    %v1787 = vunpack.c.h.b16 %v1630
    %v1788 = vunpack.c.l.b16 %v1631
    %v1789 = vunpack.c.h.b16 %v1631
    %v1790 = vunpack.c.l.b16 %v1632
    %v1791 = vunpack.c.h.b16 %v1632
    %v1792 = vunpack.c.l.b16 %v1633
    %v1793 = vunpack.c.h.b16 %v1633
    %v1794 = vunpack.c.l.b16 %v1634
    %v1795 = vunpack.c.h.b16 %v1634
    %v1796 = vunpack.c.l.b16 %v1635
    %v1797 = vunpack.c.h.b16 %v1635
    %v1798 = vunpack.c.l.b16 %v1636
    %v1799 = vunpack.c.h.b16 %v1636
    %v1800 = vunpack.c.l.b16 %v1637
    %v1801 = vunpack.c.h.b16 %v1637
    %v1802 = vunpack.c.l.b16 %v1638
    %v1803 = vunpack.c.h.b16 %v1638
    %v1804 = vunpack.c.l.b16 %v1639
    %v1805 = vunpack.c.h.b16 %v1639
    %v1806 = vunpack.c.l.b16 %v1640
    %v1807 = vunpack.c.h.b16 %v1640
    %v1808 = vunpack.c.l.b16 %v1641
    %v1809 = vunpack.c.h.b16 %v1641
    %v1810 = vunpack.c.l.b16 %v1642
    %v1811 = vunpack.c.h.b16 %v1642
    %v1812 = vunpack.c.l.b16 %v1643
    %v1813 = vunpack.c.h.b16 %v1643
    %v1814 = vunpack.c.l.b16 %v1644
    %v1815 = vunpack.c.h.b16 %v1644
    %v1816 = vunpack.c.l.b16 %v1645
    %v1817 = vunpack.c.h.b16 %v1645
    %v1818 = vunpack.c.l.b16 %v1646
    %v1819 = vunpack.c.h.b16 %v1646
    %v1820 = vunpack.c.l.b16 %v1647
    %v1821 = vunpack.c.h.b16 %v1647
    %v1822 = vunpack.c.l.b16 %v1648
    %v1823 = vunpack.c.h.b16 %v1648
    %v1824 = vunpack.c.l.b16 %v1649
    %v1825 = vunpack.c.h.b16 %v1649
    %v1826 = vunpack.c.l.b16 %v1650
    %v1827 = vunpack.c.h.b16 %v1650
    %v1828 = vunpack.c.l.b16 %v1651
    %v1829 = vunpack.c.h.b16 %v1651
    %v1830 = vunpack.c.l.b16 %v1652
    %v1831 = vunpack.c.h.b16 %v1652
    %v1832 = vunpack.c.l.b16 %v1653
    %v1833 = vunpack.c.h.b16 %v1653
    %v1834 = vunpack.c.l.b16 %v1654
    %v1835 = vunpack.c.h.b16 %v1654
    %v1836 = vunpack.c.l.b16 %v1655
    %v1837 = vunpack.c.h.b16 %v1655
    %v1838 = vunpack.c.l.b16 %v1656
    %v1839 = vunpack.c.h.b16 %v1656
    %v1840 = vunpack.c.l.b16 %v1657
    %v1841 = vunpack.c.h.b16 %v1657
    %v1842 = vunpack.c.l.b16 %v1658
    %v1843 = vunpack.c.h.b16 %v1658
    %v1844 = vunpack.c.l.b16 %v1659
    %v1845 = vunpack.c.h.b16 %v1659
    %v1846 = vunpack.c.l.b16 %v1660
    %v1847 = vunpack.c.h.b16 %v1660
    %v1848 = vunpack.c.l.b16 %v1661
    %v1849 = vunpack.c.h.b16 %v1661
    %v1850 = vunpack.c.l.b16 %v1662
    %v1851 = vunpack.c.h.b16 %v1662
    %v1852 = vunpack.c.l.b16 %v1663
    %v1853 = vunpack.c.h.b16 %v1663
    %v1854 = vunpack.c.l.b16 %v1664
    %v1855 = vunpack.c.h.b16 %v1664
    %v1856 = vunpack.c.l.b16 %v1665
    %v1857 = vunpack.c.h.b16 %v1665
    %v1858 = vunpack.c.l.b16 %v1666
    %v1859 = vunpack.c.h.b16 %v1666
    %v1860 = vunpack.c.l.b16 %v1667
    %v1861 = vunpack.c.h.b16 %v1667
    %v1862 = vunpack.c.l.b16 %v1668
    %v1863 = vunpack.c.h.b16 %v1668
    %v1864 = vunpack.c.l.b16 %v1669
    %v1865 = vunpack.c.h.b16 %v1669
    %v1866 = vunpack.c.l.b16 %v1670
    %v1867 = vunpack.c.h.b16 %v1670
    %v1868 = vunpack.c.l.b16 %v1671
    %v1869 = vunpack.c.h.b16 %v1671
    %v1870 = vunpack.c.l.b16 %v1672
    %v1871 = vunpack.c.h.b16 %v1672
    %v1872 = vunpack.c.l.b16 %v1673
    %v1873 = vunpack.c.h.b16 %v1673
    %v1874 = vunpack.c.l.b16 %v1674
    %v1875 = vunpack.c.h.b16 %v1674
    %v1876 = vunpack.c.l.b16 %v1675
    %v1877 = vunpack.c.h.b16 %v1675
    %v1878 = vunpack.c.l.b16 %v1676
    %v1879 = vunpack.c.h.b16 %v1676
    %v1880 = vunpack.c.l.b16 %v1677
    %v1881 = vunpack.c.h.b16 %v1677
    %v1882 = vpack.c.b16 %v1756, %v1754
    %v1883 = vpack.c.b16 %v1757, %v1755
    %v1884 = vpack.c.b16 %v1760, %v1758
    %v1885 = vpack.c.b16 %v1761, %v1759
    %v1886 = vpack.c.b16 %v1764, %v1762
    %v1887 = vpack.c.b16 %v1765, %v1763
    %v1888 = vpack.c.b16 %v1768, %v1766
    %v1889 = vpack.c.b16 %v1769, %v1767
    %v1890 = vpack.c.b16 %v1772, %v1770
    %v1891 = vpack.c.b16 %v1773, %v1771
    %v1892 = vpack.c.b16 %v1776, %v1774
    %v1893 = vpack.c.b16 %v1777, %v1775
    %v1894 = vpack.c.b16 %v1780, %v1778
    %v1895 = vpack.c.b16 %v1781, %v1779
    %v1896 = vpack.c.b16 %v1784, %v1782
    %v1897 = vpack.c.b16 %v1785, %v1783
    %v1898 = vpack.c.b16 %v1788, %v1786
    %v1899 = vpack.c.b16 %v1789, %v1787
    %v1900 = vpack.c.b16 %v1792, %v1790
    %v1901 = vpack.c.b16 %v1793, %v1791
    %v1902 = vpack.c.b16 %v1796, %v1794
    %v1903 = vpack.c.b16 %v1797, %v1795
    %v1904 = vpack.c.b16 %v1800, %v1798
    %v1905 = vpack.c.b16 %v1801, %v1799
    %v1906 = vpack.c.b16 %v1804, %v1802
    %v1907 = vpack.c.b16 %v1805, %v1803
    %v1908 = vpack.c.b16 %v1808, %v1806
    %v1909 = vpack.c.b16 %v1809, %v1807
    %v1910 = vpack.c.b16 %v1812, %v1810
    %v1911 = vpack.c.b16 %v1813, %v1811
    %v1912 = vpack.c.b16 %v1816, %v1814
    %v1913 = vpack.c.b16 %v1817, %v1815
    %v1914 = vpack.c.b16 %v1820, %v1818
    %v1915 = vpack.c.b16 %v1821, %v1819
    %v1916 = vpack.c.b16 %v1824, %v1822
    %v1917 = vpack.c.b16 %v1825, %v1823
    %v1918 = vpack.c.b16 %v1828, %v1826
    %v1919 = vpack.c.b16 %v1829, %v1827
    %v1920 = vpack.c.b16 %v1832, %v1830
    %v1921 = vpack.c.b16 %v1833, %v1831
    %v1922 = vpack.c.b16 %v1836, %v1834
    %v1923 = vpack.c.b16 %v1837, %v1835
    %v1924 = vpack.c.b16 %v1840, %v1838
    %v1925 = vpack.c.b16 %v1841, %v1839
    %v1926 = vpack.c.b16 %v1844, %v1842
    %v1927 = vpack.c.b16 %v1845, %v1843
    %v1928 = vpack.c.b16 %v1848, %v1846
    %v1929 = vpack.c.b16 %v1849, %v1847
    %v1930 = vpack.c.b16 %v1852, %v1850
    %v1931 = vpack.c.b16 %v1853, %v1851
    %v1932 = vpack.c.b16 %v1856, %v1854
    %v1933 = vpack.c.b16 %v1857, %v1855
    %v1934 = vpack.c.b16 %v1860, %v1858
    %v1935 = vpack.c.b16 %v1861, %v1859
    %v1936 = vpack.c.b16 %v1864, %v1862
    %v1937 = vpack.c.b16 %v1865, %v1863
    %v1938 = vpack.c.b16 %v1868, %v1866
    %v1939 = vpack.c.b16 %v1869, %v1867
    %v1940 = vpack.c.b16 %v1872, %v1870
    %v1941 = vpack.c.b16 %v1873, %v1871
    %v1942 = vpack.c.b16 %v1876, %v1874
    %v1943 = vpack.c.b16 %v1877, %v1875
    %v1944 = vpack.c.b16 %v1880, %v1878
    %v1945 = vpack.c.b16 %v1881, %v1879
    %2010 = vmatprep.subr.bf16.mxu0 %v1883
    %2011 = vmatpush1.bf16.msra.mxu0 %v1882
    %2012 = vmatprep.subr.bf16.mxu0 %v1885
    %2013 = vmatpush1.bf16.msra.mxu0 %v1884
    %2014 = vmatprep.subr.bf16.mxu0 %v1887
    %2015 = vmatpush1.bf16.msra.mxu0 %v1886
    %2016 = vmatprep.subr.bf16.mxu0 %v1889
    %2017 = vmatpush1.bf16.msra.mxu0 %v1888
    %2018 = vmatprep.subr.bf16.mxu0 %v1891
    %2019 = vmatpush1.bf16.msra.mxu0 %v1890
    %2020 = vmatprep.subr.bf16.mxu0 %v1893
    %2021 = vmatpush1.bf16.msra.mxu0 %v1892
    %2022 = vmatprep.subr.bf16.mxu0 %v1895
    %2023 = vmatpush1.bf16.msra.mxu0 %v1894
    %2024 = vmatprep.subr.bf16.mxu0 %v1897
    %2025 = vmatpush1.bf16.msra.mxu0 %v1896
    %2026 = vmatprep.subr.bf16.mxu0 %v1899
    %2027 = vmatpush1.bf16.msra.mxu0 %v1898
    %2028 = vmatprep.subr.bf16.mxu0 %v1901
    %2029 = vmatpush1.bf16.msra.mxu0 %v1900
    %2030 = vmatprep.subr.bf16.mxu0 %v1903
    %2031 = vmatpush1.bf16.msra.mxu0 %v1902
    %2032 = vmatprep.subr.bf16.mxu0 %v1905
    %2033 = vmatpush1.bf16.msra.mxu0 %v1904
    %2034 = vmatprep.subr.bf16.mxu0 %v1907
    %2035 = vmatpush1.bf16.msra.mxu0 %v1906
    %2036 = vmatprep.subr.bf16.mxu0 %v1909
    %2037 = vmatpush1.bf16.msra.mxu0 %v1908
    %2038 = vmatprep.subr.bf16.mxu0 %v1911
    %2039 = vmatpush1.bf16.msra.mxu0 %v1910
    %2040 = vmatprep.subr.bf16.mxu0 %v1913
    %2041 = vmatpush1.bf16.msra.mxu0 %v1912
    %2042 = vmatprep.mubr.bf16.mxu0 %v1611
    %2043 = vmatmul.mubr.bf16.gmra.mrb[0].mxu0 %v1610
    %v2044 = vpop.f32.mrb[0].mxu0
    %v2045 = vadd.f32 %v1683, %v2044
    %v2046 = vpop.f32.mrb[0].mxu0
    %v2047 = vadd.f32 %v1687, %v2046
    %v2048 = vpop.f32.mrb[0].mxu0
    %v2049 = vpop.f32.mrb[0].mxu0
    %2050 = vdwg.mxu0
    %2051 = vmatprep.subr.bf16.mxu0 %v1915
    %2052 = vmatpush1.bf16.msra.mxu0 %v1914
    %2053 = vmatprep.subr.bf16.mxu0 %v1917
    %2054 = vmatpush1.bf16.msra.mxu0 %v1916
    %2055 = vmatprep.subr.bf16.mxu0 %v1919
    %2056 = vmatpush1.bf16.msra.mxu0 %v1918
    %2057 = vmatprep.subr.bf16.mxu0 %v1921
    %2058 = vmatpush1.bf16.msra.mxu0 %v1920
    %2059 = vmatprep.subr.bf16.mxu0 %v1923
    %2060 = vmatpush1.bf16.msra.mxu0 %v1922
    %2061 = vmatprep.subr.bf16.mxu0 %v1925
    %2062 = vmatpush1.bf16.msra.mxu0 %v1924
    %2063 = vmatprep.subr.bf16.mxu0 %v1927
    %2064 = vmatpush1.bf16.msra.mxu0 %v1926
    %2065 = vmatprep.subr.bf16.mxu0 %v1929
    %2066 = vmatpush1.bf16.msra.mxu0 %v1928
    %2067 = vmatprep.subr.bf16.mxu0 %v1931
    %2068 = vmatpush1.bf16.msra.mxu0 %v1930
    %2069 = vmatprep.subr.bf16.mxu0 %v1933
    %2070 = vmatpush1.bf16.msra.mxu0 %v1932
    %2071 = vmatprep.subr.bf16.mxu0 %v1935
    %2072 = vmatpush1.bf16.msra.mxu0 %v1934
    %2073 = vmatprep.subr.bf16.mxu0 %v1937
    %2074 = vmatpush1.bf16.msra.mxu0 %v1936
    %2075 = vmatprep.subr.bf16.mxu0 %v1939
    %2076 = vmatpush1.bf16.msra.mxu0 %v1938
    %2077 = vmatprep.subr.bf16.mxu0 %v1941
    %2078 = vmatpush1.bf16.msra.mxu0 %v1940
    %2079 = vmatprep.subr.bf16.mxu0 %v1943
    %2080 = vmatpush1.bf16.msra.mxu0 %v1942
    %2081 = vmatprep.subr.bf16.mxu0 %v1945
    %2082 = vmatpush1.bf16.msra.mxu0 %v1944
    %2083 = vmatprep.mubr.bf16.mxu0 %v1613
    %2084 = vmatmul.mubr.bf16.gmra.mrb[0].mxu0 %v1612
    %v2085 = vpop.f32.mrb[0].mxu0
    %v2086 = vadd.f32 %v2045, %v2085
    %v2087 = vpop.f32.mrb[0].mxu0
    %v2088 = vadd.f32 %v2047, %v2087
    %v2089 = vpop.f32.mrb[0].mxu0
    %v2090 = vpop.f32.mrb[0].mxu0
    %2091 = vdwg.mxu0
    %v2092 = vmax.f32 %v2086, 0.0
    %v2093 = vmax.f32 %v2088, 0.0
    %v2094 = vpack.c.bf16 %v2092, %v2092
    %v2095 = vpack.c.bf16 %v2093, %v2093
    %v2096 = vld [vmem:[#allocation5] sm:$0xf]
    %v2097 = vld [vmem:[#allocation5 + $0x4] sm:$0xf]
    %v2098 = vld [vmem:[#allocation5 + $0x8] sm:$0xf]
    %v2099 = vld [vmem:[#allocation5 + $0xc] sm:$0xf]
    %v2100 = vld [vmem:[#allocation5 + $0x10] sm:$0xf]
    %v2101 = vld [vmem:[#allocation5 + $0x14] sm:$0xf]
    %v2102 = vld [vmem:[#allocation5 + $0x18] sm:$0xf]
    %v2103 = vld [vmem:[#allocation5 + $0x1c] sm:$0xf]
    %v2104 = vld [vmem:[#allocation5 + $0x20] sm:$0xf]
    %v2105 = vld [vmem:[#allocation5 + $0x24] sm:$0xf]
    %v2106 = vld [vmem:[#allocation5 + $0x28] sm:$0xf]
    %v2107 = vld [vmem:[#allocation5 + $0x2c] sm:$0xf]
    %v2108 = vld [vmem:[#allocation5 + $0x30] sm:$0xf]
    %v2109 = vld [vmem:[#allocation5 + $0x34] sm:$0xf]
    %v2110 = vld [vmem:[#allocation5 + $0x38] sm:$0xf]
    %v2111 = vld [vmem:[#allocation5 + $0x3c] sm:$0xf]
    %v2112 = vld [vmem:[#allocation5 + $0x40] sm:$0xf]
    %v2113 = vld [vmem:[#allocation5 + $0x44] sm:$0xf]
    %v2114 = vld [vmem:[#allocation5 + $0x48] sm:$0xf]
    %v2115 = vld [vmem:[#allocation5 + $0x4c] sm:$0xf]
    %v2116 = vld [vmem:[#allocation5 + $0x50] sm:$0xf]
    %v2117 = vld [vmem:[#allocation5 + $0x54] sm:$0xf]
    %v2118 = vld [vmem:[#allocation5 + $0x58] sm:$0xf]
    %v2119 = vld [vmem:[#allocation5 + $0x5c] sm:$0xf]
    %v2120 = vld [vmem:[#allocation5 + $0x60] sm:$0xf]
    %v2121 = vld [vmem:[#allocation5 + $0x64] sm:$0xf]
    %v2122 = vld [vmem:[#allocation5 + $0x68] sm:$0xf]
    %v2123 = vld [vmem:[#allocation5 + $0x6c] sm:$0xf]
    %v2124 = vld [vmem:[#allocation5 + $0x70] sm:$0xf]
    %v2125 = vld [vmem:[#allocation5 + $0x74] sm:$0xf]
    %v2126 = vld [vmem:[#allocation5 + $0x78] sm:$0xf]
    %v2127 = vld [vmem:[#allocation5 + $0x7c] sm:$0xf]
    %v2128 = vld [vmem:[%s6] sm:$0x1]
    %v2130 = vlaneseq
    %v2131 = vshrl.u32 %v2130, 7
    %v2132 = vsub.s32 0, %v2131
    %v2133 = vrot.slane %v2128, %v2132
    %v2167 = vunpack.c.l.b16 %v2096
    %v2168 = vunpack.c.l.b16 %v2097
    %v2169 = vunpack.c.l.b16 %v2098
    %v2170 = vunpack.c.l.b16 %v2099
    %v2171 = vunpack.c.l.b16 %v2100
    %v2172 = vunpack.c.l.b16 %v2101
    %v2173 = vunpack.c.l.b16 %v2102
    %v2174 = vunpack.c.l.b16 %v2103
    %v2175 = vunpack.c.l.b16 %v2104
    %v2176 = vunpack.c.l.b16 %v2105
    %v2177 = vunpack.c.l.b16 %v2106
    %v2178 = vunpack.c.l.b16 %v2107
    %v2179 = vunpack.c.l.b16 %v2108
    %v2180 = vunpack.c.l.b16 %v2109
    %v2181 = vunpack.c.l.b16 %v2110
    %v2182 = vunpack.c.l.b16 %v2111
    %v2183 = vunpack.c.l.b16 %v2112
    %v2184 = vunpack.c.l.b16 %v2113
    %v2185 = vunpack.c.l.b16 %v2114
    %v2186 = vunpack.c.l.b16 %v2115
    %v2187 = vunpack.c.l.b16 %v2116
    %v2188 = vunpack.c.l.b16 %v2117
    %v2189 = vunpack.c.l.b16 %v2118
    %v2190 = vunpack.c.l.b16 %v2119
    %v2191 = vunpack.c.l.b16 %v2120
    %v2192 = vunpack.c.l.b16 %v2121
    %v2193 = vunpack.c.l.b16 %v2122
    %v2194 = vunpack.c.l.b16 %v2123
    %v2195 = vunpack.c.l.b16 %v2124
    %v2196 = vunpack.c.l.b16 %v2125
    %v2197 = vunpack.c.l.b16 %v2126
    %v2198 = vunpack.c.l.b16 %v2127
    %v2199 = vpack.c.b16 %v2168, %v2167
    %v2200 = vpack.c.b16 %v2170, %v2169
    %v2201 = vpack.c.b16 %v2172, %v2171
    %v2202 = vpack.c.b16 %v2174, %v2173
    %v2203 = vpack.c.b16 %v2176, %v2175
    %v2204 = vpack.c.b16 %v2178, %v2177
    %v2205 = vpack.c.b16 %v2180, %v2179
    %v2206 = vpack.c.b16 %v2182, %v2181
    %v2207 = vpack.c.b16 %v2184, %v2183
    %v2208 = vpack.c.b16 %v2186, %v2185
    %v2209 = vpack.c.b16 %v2188, %v2187
    %v2210 = vpack.c.b16 %v2190, %v2189
    %v2211 = vpack.c.b16 %v2192, %v2191
    %v2212 = vpack.c.b16 %v2194, %v2193
    %v2213 = vpack.c.b16 %v2196, %v2195
    %v2214 = vpack.c.b16 %v2198, %v2197
    %2231 = vmatprep.subr.bf16.mxu0 0
    %2232 = vmatpush1.bf16.msra.mxu0 %v2199
    %2233 = vmatprep.subr.bf16.mxu0 0
    %2234 = vmatpush1.bf16.msra.mxu0 %v2200
    %2235 = vmatprep.subr.bf16.mxu0 0
    %2236 = vmatpush1.bf16.msra.mxu0 %v2201
    %2237 = vmatprep.subr.bf16.mxu0 0
    %2238 = vmatpush1.bf16.msra.mxu0 %v2202
    %2239 = vmatprep.subr.bf16.mxu0 0
    %2240 = vmatpush1.bf16.msra.mxu0 %v2203
    %2241 = vmatprep.subr.bf16.mxu0 0
    %2242 = vmatpush1.bf16.msra.mxu0 %v2204
    %2243 = vmatprep.subr.bf16.mxu0 0
    %2244 = vmatpush1.bf16.msra.mxu0 %v2205
    %2245 = vmatprep.subr.bf16.mxu0 0
    %2246 = vmatpush1.bf16.msra.mxu0 %v2206
    %2247 = vmatprep.subr.bf16.mxu0 0
    %2248 = vmatpush1.bf16.msra.mxu0 %v2207
    %2249 = vmatprep.subr.bf16.mxu0 0
    %2250 = vmatpush1.bf16.msra.mxu0 %v2208
    %2251 = vmatprep.subr.bf16.mxu0 0
    %2252 = vmatpush1.bf16.msra.mxu0 %v2209
    %2253 = vmatprep.subr.bf16.mxu0 0
    %2254 = vmatpush1.bf16.msra.mxu0 %v2210
    %2255 = vmatprep.subr.bf16.mxu0 0
    %2256 = vmatpush1.bf16.msra.mxu0 %v2211
    %2257 = vmatprep.subr.bf16.mxu0 0
    %2258 = vmatpush1.bf16.msra.mxu0 %v2212
    %2259 = vmatprep.subr.bf16.mxu0 0
    %2260 = vmatpush1.bf16.msra.mxu0 %v2213
    %2261 = vmatprep.subr.bf16.mxu0 0
    %2262 = vmatpush1.bf16.msra.mxu0 %v2214
    %2263 = vmatprep.mubr.bf16.mxu0 %v2095
    %2264 = vmatmul.mubr.bf16.gmra.mrb[0].mxu0 %v2094
    %v2265 = vpop.f32.mrb[0].mxu0
    %v2266 = vadd.f32 %v2133, %v2265
    %v2267 = vpop.f32.mrb[0].mxu0
    %v2268 = vpop.f32.mrb[0].mxu0
    %v2269 = vpop.f32.mrb[0].mxu0
    %2270 = vdwg.mxu0
    %v2271 = vmax.f32 %v2266, 0.0
    %v2272 = vpack.c.bf16 %v2271, %v2271
    %v2273 = vld [vmem:[%s7] sm:$0xf]
    %v2274 = vld [vmem:[%s7 + $0x4] sm:$0xf]
    %v2275 = vld [vmem:[%s7 + $0x8] sm:$0xf]
    %v2276 = vld [vmem:[%s7 + $0xc] sm:$0xf]
    %v2277 = vld [vmem:[%s7 + $0x10] sm:$0xf]
    %v2278 = vld [vmem:[%s7 + $0x14] sm:$0xf]
    %v2279 = vld [vmem:[%s7 + $0x18] sm:$0xf]
    %v2280 = vld [vmem:[%s7 + $0x1c] sm:$0xf]
    %v2281 = vld [vmem:[%s7 + $0x20] sm:$0xf]
    %v2282 = vld [vmem:[%s7 + $0x24] sm:$0xf]
    %v2283 = vld [vmem:[%s7 + $0x28] sm:$0xf]
    %v2284 = vld [vmem:[%s7 + $0x2c] sm:$0xf]
    %v2285 = vld [vmem:[%s7 + $0x30] sm:$0xf]
    %v2286 = vld [vmem:[%s7 + $0x34] sm:$0xf]
    %v2287 = vld [vmem:[%s7 + $0x38] sm:$0xf]
    %v2288 = vld [vmem:[%s7 + $0x3c] sm:$0xf]
    %v2289 = vld [vmem:[%s8] sm:$0x1]
    %v2291 = vlaneseq
    %v2292 = vshrl.u32 %v2291, 7
    %v2293 = vsub.s32 0, %v2292
    %v2294 = vrot.slane %v2289, %v2293
    %v2312 = vunpack.c.l.b16 %v2273
    %v2313 = vunpack.c.l.b16 %v2274
    %v2314 = vunpack.c.l.b16 %v2275
    %v2315 = vunpack.c.l.b16 %v2276
    %v2316 = vunpack.c.l.b16 %v2277
    %v2317 = vunpack.c.l.b16 %v2278
    %v2318 = vunpack.c.l.b16 %v2279
    %v2319 = vunpack.c.l.b16 %v2280
    %v2320 = vunpack.c.l.b16 %v2281
    %v2321 = vunpack.c.l.b16 %v2282
    %v2322 = vunpack.c.l.b16 %v2283
    %v2323 = vunpack.c.l.b16 %v2284
    %v2324 = vunpack.c.l.b16 %v2285
    %v2325 = vunpack.c.l.b16 %v2286
    %v2326 = vunpack.c.l.b16 %v2287
    %v2327 = vunpack.c.l.b16 %v2288
    %v2328 = vpack.c.b16 %v2313, %v2312
    %v2329 = vpack.c.b16 %v2315, %v2314
    %v2330 = vpack.c.b16 %v2317, %v2316
    %v2331 = vpack.c.b16 %v2319, %v2318
    %v2332 = vpack.c.b16 %v2321, %v2320
    %v2333 = vpack.c.b16 %v2323, %v2322
    %v2334 = vpack.c.b16 %v2325, %v2324
    %v2335 = vpack.c.b16 %v2327, %v2326
    %2344 = vmatprep.subr.bf16.mxu0 0
    %2345 = vmatpush1.bf16.msra.mxu0 %v2328
    %2346 = vmatprep.subr.bf16.mxu0 0
    %2347 = vmatpush1.bf16.msra.mxu0 %v2329
    %2348 = vmatprep.subr.bf16.mxu0 0
    %2349 = vmatpush1.bf16.msra.mxu0 %v2330
    %2350 = vmatprep.subr.bf16.mxu0 0
    %2351 = vmatpush1.bf16.msra.mxu0 %v2331
    %2352 = vmatprep.subr.bf16.mxu0 0
    %2353 = vmatpush1.bf16.msra.mxu0 %v2332
    %2354 = vmatprep.subr.bf16.mxu0 0
    %2355 = vmatpush1.bf16.msra.mxu0 %v2333
    %2356 = vmatprep.subr.bf16.mxu0 0
    %2357 = vmatpush1.bf16.msra.mxu0 %v2334
    %2358 = vmatprep.subr.bf16.mxu0 0
    %2359 = vmatpush1.bf16.msra.mxu0 %v2335
    %2360 = vmatprep.subr.bf16.mxu0 0
    %2361 = vmatpush1.bf16.msra.mxu0 0
    %2362 = vmatprep.subr.bf16.mxu0 0
    %2363 = vmatpush1.bf16.msra.mxu0 0
    %2364 = vmatprep.subr.bf16.mxu0 0
    %2365 = vmatpush1.bf16.msra.mxu0 0
    %2366 = vmatprep.subr.bf16.mxu0 0
    %2367 = vmatpush1.bf16.msra.mxu0 0
    %2368 = vmatprep.subr.bf16.mxu0 0
    %2369 = vmatpush1.bf16.msra.mxu0 0
    %2370 = vmatprep.subr.bf16.mxu0 0
    %2371 = vmatpush1.bf16.msra.mxu0 0
    %2372 = vmatprep.subr.bf16.mxu0 0
    %2373 = vmatpush1.bf16.msra.mxu0 0
    %2374 = vmatprep.subr.bf16.mxu0 0
    %2375 = vmatpush1.bf16.msra.mxu0 0
    %2376 = vmatprep.mubr.bf16.mxu0 0
    %2377 = vmatmul.mubr.bf16.gmra.mrb[0].mxu0 %v2272
    %v2378 = vpop.f32.mrb[0].mxu0
    %v2379 = vadd.f32 %v2294, %v2378
    %v2380 = vpop.f32.mrb[0].mxu0
    %v2381 = vpop.f32.mrb[0].mxu0
    %v2382 = vpop.f32.mrb[0].mxu0
    %2383 = vdwg.mxu0
    %2384 = vst [vmem:[#allocation7] sm:$0xff] %v2379
    // Predicated region
    $region46: #{fully_connected_nn.1} parent=1 // pred_check
      _
    $region47: #{fully_connected_nn.1} parent=1 // pred_check_branch
      %2386 = sbr.rel (0) target = $region49
    $region48: #{fully_connected_nn.1} parent=1 // pred_region
      %s2388 = ssub.s32 128, 128
      %2389 = vsyncadd [#allocation4], %s2388
      %s2391 = sshll.u32 [#allocation7], 4
      %s2392 = int_to_ptr.vmem [resolvable:$true] %s2391
      %2394 = dma.vmem_to_hbm [thread:$0]  %s2392, 128, %s9, [#allocation4]
    $region49: #{fully_connected_nn.1} parent=1 // pred_fallthru
      _
    // Predicated region
    $region50: #{fully_connected_nn.1} parent=1 // pred_check
      _
    $region51: #{fully_connected_nn.1} parent=1 // pred_check_branch
      %2396 = sbr.rel (0) target = $region53
    $region52: #{fully_connected_nn.1} parent=1 // pred_region
      %2397 = dma.done [#allocation4], 128
    $region53: #{fully_connected_nn.1} parent=1 // pred_fallthru
      _
    %2398 = vsyncpa [#allocation3], 1
    %2399 = vsyncpa [#allocation6], 1
    %2400 = vsyncpa [#allocation4], 1

</llo_original>
